<compile_context>
chip_gen: v7x
topology: tpu7x:2x2x1
jax: 0.10.0
libtpu: 0.0.40
codegen_flags: <defaults>
</compile_context>

<pallas_src>
import functools

import jax
import jax.numpy as jnp
from jax.experimental import pallas as pl
from jax.experimental.pallas import tpu as pltpu


# ---------------------------------------------------------------------------
# Generation-aware tuning
# ---------------------------------------------------------------------------
def _tpu_vmem_capacity_bytes():
    try:
        info = pltpu.get_tpu_info()
        cap = int(getattr(info, "vmem_capacity_bytes", 0))
        if cap > 0:
            return cap
    except Exception:
        pass
    return 64 * 1024 * 1024            # conservative default (v7x per-core VMEM)


def _default_tuning():
    cap = _tpu_vmem_capacity_bytes()
    vmem_limit = min((cap * 3) // 4, 100 * 1024 * 1024)   # ~96 MiB on v5e/v6e, 48 MiB on v7x
    # v5e/v6e (128 MiB VMEM): TM=256 fills the 256x256 MXU and halves grid-step count.
    # v7x (64 MiB): keep TM=128 until src-axis chunking bounds the (TM, N) temporaries.
    block_rows = 256 if cap >= 100 * 1024 * 1024 else 128
    return block_rows, vmem_limit


# ---------------------------------------------------------------------------
# Pass 1: per-node projection + attention scores (tiled over node-row blocks)
# ---------------------------------------------------------------------------
def _gat_project_kernel(x_ref, w_ref, asrc_mat_ref, adst_mat_ref,
                        hw_ref, a_src_ref, a_dst_ref):
    f32 = jnp.float32
    hw = jnp.dot(x_ref[...], w_ref[...], preferred_element_type=f32)       # [TM, H*Cp] f32
    # attention scores from the f32 accumulation (before the bf16 storage cast)
    # a_src[h, j] = sum_c hw[j, h*Cp+c] * att_src[h, c]   -> [Hp, TM]
    a_src_ref[...] = jax.lax.dot_general(
        asrc_mat_ref[...], hw, (((1,), (1,)), ((), ())), preferred_element_type=f32)
    # a_dst[i, h] = sum_c hw[i, h*Cp+c] * att_dst[h, c]   -> [TM, Hp]
    a_dst_ref[...] = jnp.dot(hw, adst_mat_ref[...], preferred_element_type=f32)
    hw_ref[...] = hw.astype(hw_ref.dtype)                                  # bf16 store


# ---------------------------------------------------------------------------
# Pass 2: attention + aggregation, streamed over dst-row blocks of adjacency
# ---------------------------------------------------------------------------
def _gat_attn_kernel(adj_ref, hw_ref, a_src_ref, a_dst_ref, b_ref, o_ref, acc_ref,
                     *, num_heads, c_per_head, apply_relu):
    f32 = jnp.float32
    edge = adj_ref[...].astype(f32) > 0.0         # (TM, N) bool, adjacency streamed as int8
    a_dst = a_dst_ref[...]                        # (TM, Hp) f32
    a_src = a_src_ref[...]                        # (Hp, N)  f32
    neg = jnp.float32(-1e30)

    for h in range(num_heads):                    # unrolled; heads are few
        e = a_dst[:, h:h + 1] + a_src[h:h + 1, :]                     # (TM, N) f32
        e = jnp.maximum(e, 0.2 * e)                                   # LeakyReLU(0.2): mul+max
        e = jnp.where(edge, e, neg)                                   # single mask select
        m = jnp.max(e, axis=-1, keepdims=True)
        p = jnp.exp(e - m)                                            # exactly 0 for non-edges
        denom = jnp.sum(p, axis=-1, keepdims=True)                    # (TM, 1) f32, >= 1 (self-loop)
        hw_h = hw_ref[:, h * c_per_head:(h + 1) * c_per_head]         # (N, Cp) resident bf16 slice
        # native bf16 MXU matmul with f32 accumulation
        o = jnp.dot(p.astype(hw_h.dtype), hw_h, preferred_element_type=f32)
        # fold softmax normalization into the [TM, Cp] side (EUP reciprocal, no N^2 divide);
        # per-head write into the f32 VMEM slab (no concat / lane relayout)
        acc_ref[:, h * c_per_head:(h + 1) * c_per_head] = o * pl.reciprocal(denom, approx=True)

    out = acc_ref[...] + b_ref[...]
    if apply_relu:
        out = jnp.maximum(out, 0.0)
    o_ref[...] = out.astype(o_ref.dtype)          # single lane-dense (128-lane multiple) store


# ---------------------------------------------------------------------------
# Wrappers
# ---------------------------------------------------------------------------
def _build_padded_gat_params(w, att_src, att_dst, bias, c_pad):
    """Lay head-blocked weights / attention vectors into lane-padded slabs."""
    f_in, hc = w.shape
    H, C = att_src.shape
    assert hc == H * C
    Cp = C if c_pad is None else max(c_pad, C)
    Hp = 8                                        # pad head axis to one sublane group
    w_p = jnp.zeros((f_in, H * Cp), jnp.float32)
    b_p = jnp.zeros((1, H * Cp), jnp.float32)
    asrc_m = jnp.zeros((Hp, H * Cp), jnp.float32)
    adst_m = jnp.zeros((H * Cp, Hp), jnp.float32)
    for h in range(H):
        w_p = w_p.at[:, h * Cp:h * Cp + C].set(w[:, h * C:(h + 1) * C])
        b_p = b_p.at[0, h * Cp:h * Cp + C].set(bias[h * C:(h + 1) * C])
        asrc_m = asrc_m.at[h, h * Cp:h * Cp + C].set(att_src[h])
        adst_m = adst_m.at[h * Cp:h * Cp + C, h].set(att_dst[h])
    return w_p, asrc_m, adst_m, b_p, Cp, Hp


def gat_conv(x, adj_i8, w, att_src, att_dst, bias, *,
             c_pad=None, apply_relu=False, block_rows=128,
             vmem_limit_bytes=48 * 1024 * 1024, single_buffer_constants=True):
    """One GATConv layer (heads concat, self-loops already in adj). adj_i8[dst, src] in {0,1}."""
    n, f_in = x.shape
    H, C = att_src.shape
    assert adj_i8.shape == (n, n)
    assert n % block_rows == 0, "caller must pad N to a multiple of block_rows"
    w_p, asrc_m, adst_m, b_p, Cp, Hp = _build_padded_gat_params(w, att_src, att_dst, bias, c_pad)
    HCp = H * Cp
    tm = block_rows
    grid = (n // tm,)

    cparams = pltpu.CompilerParams(
        dimension_semantics=("parallel",),        # dst-row blocks are independent
        vmem_limit_bytes=vmem_limit_bytes)

    zero2 = lambda i: (0, 0)

    def const_spec(block_shape):
        """Grid-constant input: single-buffer it (its block index never changes, so the
        default double-buffering just wastes VMEM). Falls back if Buffered(1) unsupported."""
        if single_buffer_constants:
            try:
                return pl.BlockSpec(block_shape, zero2, pipeline_mode=pl.Buffered(1))
            except Exception:
                pass
        return pl.BlockSpec(block_shape, zero2)

    # --- pass 1: projection + scores (hw stored bf16, scores from f32 accumulation) ---
    hw, a_src, a_dst = pl.pallas_call(
        _gat_project_kernel,
        grid=grid,
        in_specs=[pl.BlockSpec((tm, f_in), lambda i: (i, 0)),
                  const_spec((f_in, HCp)),
                  const_spec((Hp, HCp)),
                  const_spec((HCp, Hp))],
        out_specs=[pl.BlockSpec((tm, HCp), lambda i: (i, 0)),
                   pl.BlockSpec((Hp, tm), lambda i: (0, i)),
                   pl.BlockSpec((tm, Hp), lambda i: (i, 0))],
        out_shape=[jax.ShapeDtypeStruct((n, HCp), jnp.bfloat16),
                   jax.ShapeDtypeStruct((Hp, n), jnp.float32),
                   jax.ShapeDtypeStruct((n, Hp), jnp.float32)],
        compiler_params=cparams,
    )(x, w_p, asrc_m, adst_m)

    # --- pass 2: attention over streamed int8 adjacency row blocks ---
    attn_kernel = functools.partial(_gat_attn_kernel, num_heads=H,
                                    c_per_head=Cp, apply_relu=apply_relu)
    cost = pl.CostEstimate(
        flops=2 * n * n * Cp * H + 6 * n * n * H,
        transcendentals=n * n * H,
        bytes_accessed=n * n * 1 + n * HCp * (2 + 4) + 2 * n * Hp * 4)
    out = pl.pallas_call(
        attn_kernel,
        grid=grid,
        in_specs=[pl.BlockSpec((tm, n), lambda i: (i, 0)),    # adjacency: streamed dst-row block (int8)
                  const_spec((n, HCp)),                       # hw: bf16, VMEM-resident, single-buffered
                  const_spec((Hp, n)),                        # a_src: resident
                  pl.BlockSpec((tm, Hp), lambda i: (i, 0)),   # a_dst: per-block rows
                  const_spec((1, HCp))],                      # bias
        out_specs=pl.BlockSpec((tm, HCp), lambda i: (i, 0)),  # lane-dense (padded) output
        out_shape=jax.ShapeDtypeStruct((n, HCp), jnp.float32),
        scratch_shapes=[pltpu.VMEM((tm, HCp), jnp.float32)],  # per-head accumulation slab
        compiler_params=cparams,
        cost_estimate=cost,
    )(adj_i8, hw, a_src, a_dst, b_p)

    # strip per-head lane padding (no-op when Cp == C)
    return out.reshape(n, H, Cp)[:, :, :C].reshape(n, H * C)


def gat_forward(x, adj_sl, params, *, block_rows=None, single_buffer_constants=True):
    """Full module forward: conv1(heads) -> ReLU -> conv2(1 head)."""
    n = x.shape[0]
    auto_tm, vmem_limit = _default_tuning()
    if block_rows is None:
        block_rows = auto_tm

    # Pad N up to a multiple of the row tile: keeps the tiled, pipelined grid (no single-block
    # fallback).  Padded rows get a self-loop so their (discarded) softmax rows stay benign.
    n_pad = ((n + block_rows - 1) // block_rows) * block_rows
    if n_pad != n:
        pad = n_pad - n
        x = jnp.pad(x, ((0, pad), (0, 0)))
        adj_sl = jnp.pad(adj_sl, ((0, pad), (0, pad)))
        ar = jnp.arange(n, n_pad)
        adj_sl = adj_sl.at[ar, ar].set(1.0)

    adj_i8 = (adj_sl > 0).astype(jnp.int8)        # 0/1 adjacency at 1 B/elem (halves N^2 HBM stream)

    kw = dict(block_rows=block_rows, vmem_limit_bytes=vmem_limit,
              single_buffer_constants=single_buffer_constants)
    h1 = gat_conv(x, adj_i8, params["w1"], params["att_src1"], params["att_dst1"],
                  params["b1"], c_pad=None, apply_relu=True, **kw)
    h2 = gat_conv(h1, adj_i8, params["w2"], params["att_src2"], params["att_dst2"],
                  params["b2"], c_pad=128, apply_relu=False, **kw)
    return h2[:n]


# ---------------------------------------------------------------------------
# Pure-JAX references for correctness checks.
#   bf16_storage=False : exact f32 module semantics.
#   bf16_storage=True  : mirrors the kernel's bf16 hw storage + bf16 p@hw (tight check).
# ---------------------------------------------------------------------------
def _reference_gat(x, adj_sl, params, *, bf16_storage=False):
    def gat(h, w, att_src, att_dst, bias):
        n = h.shape[0]
        H, C = att_src.shape
        hw = (h @ w).reshape(n, H, C)
        a_src = jnp.einsum("nhc,hc->hn", hw, att_src)
        a_dst = jnp.einsum("nhc,hc->nh", hw, att_dst)
        hw_use = hw.astype(jnp.bfloat16) if bf16_storage else hw
        outs = []
        for hd in range(H):
            e = a_dst[:, hd:hd + 1] + a_src[hd][None, :]
            e = jnp.maximum(e, 0.2 * e)                      # identical to where(e>0, e, 0.2e)
            e = jnp.where(adj_sl > 0, e, -1e30)
            e = e - e.max(-1, keepdims=True)
            p = jnp.exp(e)
            denom = p.sum(-1, keepdims=True)
            if bf16_storage:
                o = jnp.dot(p.astype(jnp.bfloat16), hw_use[:, hd, :],
                            preferred_element_type=jnp.float32)
            else:
                o = p @ hw_use[:, hd, :]
            outs.append(o / denom)
        return jnp.concatenate(outs, -1) + bias

    x1 = gat(x, params["w1"], params["att_src1"], params["att_dst1"], params["b1"])
    x1 = jnp.maximum(x1, 0.0)
    return gat(x1, params["w2"], params["att_src2"], params["att_dst2"], params["b2"])


if __name__ == "__main__":
    N, F_IN, HID, HEADS, C_OUT = 256, 16, 32, 4, 8   # conv1 out = HEADS*HID = 128 (lane dense)
    key = jax.random.PRNGKey(0)
    ks = jax.random.split(key, 12)

    x = jax.random.normal(ks[0], (N, F_IN), jnp.float32)

    # Ring + skip edges, symmetric; edge_index convention src->dst, adj[dst, src].
    idx = jnp.arange(N)
    src = jnp.concatenate([idx, (idx + 1) % N, (idx + 7) % N])
    dst = jnp.concatenate([(idx + 1) % N, idx, idx])
    adj = jnp.zeros((N, N), jnp.float32).at[dst, src].set(1.0)
    adj = jnp.maximum(adj, adj.T)
    adj_sl = jnp.where(adj + jnp.eye(N, dtype=jnp.float32) > 0, 1.0, 0.0)  # + self loops (glue)

    def init(k, shape, scale=0.2):
        return scale * jax.random.normal(k, shape, jnp.float32)

    params = dict(
        w1=init(ks[1], (F_IN, HEADS * HID)),
        att_src1=init(ks[2], (HEADS, HID)),
        att_dst1=init(ks[3], (HEADS, HID)),
        b1=init(ks[4], (HEADS * HID,), 0.1),
        w2=init(ks[5], (HEADS * HID, C_OUT)),
        att_src2=init(ks[6], (1, C_OUT)),
        att_dst2=init(ks[7], (1, C_OUT)),
        b2=init(ks[8], (C_OUT,), 0.1),
    )

    try:
        out = gat_forward(x, adj_sl, params, single_buffer_constants=True)
        out = jax.block_until_ready(out)
    except Exception:
        # pipeline_mode=pl.Buffered(1) not supported by this Pallas version: retry double-buffered
        out = gat_forward(x, adj_sl, params, single_buffer_constants=False)
        out = jax.block_until_ready(out)

    assert out.shape == (N, C_OUT)

    # Tight check against a reference that mirrors the kernel's bf16 storage: residual error is
    # only the approximate EUP reciprocal + accumulation order, so this catches layout/indexing bugs.
    ref_bf16 = _reference_gat(x, adj_sl, params, bf16_storage=True)
    assert jnp.allclose(out, ref_bf16, atol=1e-2, rtol=1e-2), "mismatch vs bf16-matched reference"

    # Loose end-to-end check against the exact f32 module semantics (covers bf16 hw/p error).
    ref_exact = _reference_gat(x, adj_sl, params, bf16_storage=False)
    rel_err = jnp.linalg.norm(out - ref_exact) / jnp.linalg.norm(ref_exact)
    assert rel_err < 3e-2, f"relative error vs f32 reference too large: {rel_err}"

    print("KERNEL_OK")
</pallas_src>

<mosaic_0001>
module attributes {stable_mosaic.version = 11 : i64} {
  func.func @_gat_project_kernel(%arg0: i32, %arg1: memref<128x16xf32, #tpu.memory_space<vmem>>, %arg2: memref<16x128xf32, #tpu.memory_space<vmem>>, %arg3: memref<8x128xf32, #tpu.memory_space<vmem>>, %arg4: memref<128x8xf32, #tpu.memory_space<vmem>>, %arg5: memref<128x128xbf16, #tpu.memory_space<vmem>>, %arg6: memref<8x128xf32, #tpu.memory_space<vmem>>, %arg7: memref<128x8xf32, #tpu.memory_space<vmem>>) attributes {dimension_semantics = [#tpu.dimension_semantics<parallel>], iteration_bounds = array<i64: 2>, scalar_prefetch = 0 : i64, scratch_operands = 0 : i64, tpu.core_type = #tpu.core_type<tc>, window_params = [{transform_indices = @transform_0, window_bounds = array<i64: 128, 16>}, {pipeline_mode = #tpu.pipeline_mode<synchronous>, transform_indices = @transform_1, window_bounds = array<i64: 16, 128>}, {pipeline_mode = #tpu.pipeline_mode<synchronous>, transform_indices = @transform_2, window_bounds = array<i64: 8, 128>}, {pipeline_mode = #tpu.pipeline_mode<synchronous>, transform_indices = @transform_3, window_bounds = array<i64: 128, 8>}, {transform_indices = @transform_4, window_bounds = array<i64: 128, 128>}, {transform_indices = @transform_5, window_bounds = array<i64: 8, 128>}, {transform_indices = @transform_6, window_bounds = array<i64: 128, 8>}]} {
    %c0 = arith.constant 0 : index
    %c0_0 = arith.constant 0 : index
    %0 = vector.load %arg1[%c0, %c0_0] : memref<128x16xf32, #tpu.memory_space<vmem>>, vector<128x16xf32>
    %c0_1 = arith.constant 0 : index
    %c0_2 = arith.constant 0 : index
    %1 = vector.load %arg2[%c0_1, %c0_2] : memref<16x128xf32, #tpu.memory_space<vmem>>, vector<16x128xf32>
    %cst = arith.constant dense<0.000000e+00> : vector<128x128xf32>
    %2 = tpu.matmul %0, %1, %cst {dimension_numbers = #tpu.dot_dimension_numbers<[1], [0], [0], [1], [0, 0, 1, 1], [], []>} : vector<128x16xf32>, vector<16x128xf32>, vector<128x128xf32> -> vector<128x128xf32>
    %c0_3 = arith.constant 0 : index
    %c0_4 = arith.constant 0 : index
    %3 = vector.load %arg3[%c0_3, %c0_4] : memref<8x128xf32, #tpu.memory_space<vmem>>, vector<8x128xf32>
    %cst_5 = arith.constant dense<0.000000e+00> : vector<8x128xf32>
    %4 = tpu.matmul %3, %2, %cst_5 {dimension_numbers = #tpu.dot_dimension_numbers<[1], [1], [0], [0], [0, 0, 1, 0], [], []>} : vector<8x128xf32>, vector<128x128xf32>, vector<8x128xf32> -> vector<8x128xf32>
    %c0_6 = arith.constant 0 : index
    %c0_7 = arith.constant 0 : index
    %5 = vector.load %arg6[%c0_6, %c0_7] : memref<8x128xf32, #tpu.memory_space<vmem>>, vector<8x128xf32>
    tpu.vector_store %arg6[%c0_6, %c0_7], %4 {strides = array<i32>} : memref<8x128xf32, #tpu.memory_space<vmem>>, vector<8x128xf32>,
    %c0_8 = arith.constant 0 : index
    %c0_9 = arith.constant 0 : index
    %6 = vector.load %arg4[%c0_8, %c0_9] : memref<128x8xf32, #tpu.memory_space<vmem>>, vector<128x8xf32>
    %cst_10 = arith.constant dense<0.000000e+00> : vector<128x8xf32>
    %7 = tpu.matmul %2, %6, %cst_10 {dimension_numbers = #tpu.dot_dimension_numbers<[1], [0], [0], [1], [0, 0, 1, 1], [], []>} : vector<128x128xf32>, vector<128x8xf32>, vector<128x8xf32> -> vector<128x8xf32>
    %c0_11 = arith.constant 0 : index
    %c0_12 = arith.constant 0 : index
    %8 = vector.load %arg7[%c0_11, %c0_12] : memref<128x8xf32, #tpu.memory_space<vmem>>, vector<128x8xf32>
    tpu.vector_store %arg7[%c0_11, %c0_12], %7 {strides = array<i32>} : memref<128x8xf32, #tpu.memory_space<vmem>>, vector<128x8xf32>,
    %9 = arith.truncf %2 : vector<128x128xf32> to vector<128x128xbf16>
    %c0_13 = arith.constant 0 : index
    %c0_14 = arith.constant 0 : index
    %10 = vector.load %arg5[%c0_13, %c0_14] : memref<128x128xbf16, #tpu.memory_space<vmem>>, vector<128x128xbf16>
    tpu.vector_store %arg5[%c0_13, %c0_14], %9 {strides = array<i32>} : memref<128x128xbf16, #tpu.memory_space<vmem>>, vector<128x128xbf16>,
    return
  }
  func.func @transform_0(%arg0: i32) -> (i32, i32) {
    %c0_i32 = arith.constant 0 : i32
    %c0_i32_0 = arith.constant 0 : i32
    return %arg0, %c0_i32 : i32, i32
  }
  func.func @transform_1(%arg0: i32) -> (i32, i32) {
    %c0_i32 = arith.constant 0 : i32
    %c0_i32_0 = arith.constant 0 : i32
    %c0_i32_1 = arith.constant 0 : i32
    return %c0_i32, %c0_i32_0 : i32, i32
  }
  func.func @transform_2(%arg0: i32) -> (i32, i32) {
    %c0_i32 = arith.constant 0 : i32
    %c0_i32_0 = arith.constant 0 : i32
    %c0_i32_1 = arith.constant 0 : i32
    return %c0_i32, %c0_i32_0 : i32, i32
  }
  func.func @transform_3(%arg0: i32) -> (i32, i32) {
    %c0_i32 = arith.constant 0 : i32
    %c0_i32_0 = arith.constant 0 : i32
    %c0_i32_1 = arith.constant 0 : i32
    return %c0_i32, %c0_i32_0 : i32, i32
  }
  func.func @transform_4(%arg0: i32) -> (i32, i32) {
    %c0_i32 = arith.constant 0 : i32
    %c0_i32_0 = arith.constant 0 : i32
    return %arg0, %c0_i32 : i32, i32
  }
  func.func @transform_5(%arg0: i32) -> (i32, i32) {
    %c0_i32 = arith.constant 0 : i32
    %c0_i32_0 = arith.constant 0 : i32
    return %c0_i32, %arg0 : i32, i32
  }
  func.func @transform_6(%arg0: i32) -> (i32, i32) {
    %c0_i32 = arith.constant 0 : i32
    %c0_i32_0 = arith.constant 0 : i32
    return %arg0, %c0_i32 : i32, i32
  }
}

module attributes {stable_mosaic.version = 11 : i64} {
  func.func @_gat_project_kernel(%arg0: i32, %arg1: memref<128x16xf32, #tpu.memory_space<vmem>>, %arg2: memref<16x128xf32, #tpu.memory_space<vmem>>, %arg3: memref<8x128xf32, #tpu.memory_space<vmem>>, %arg4: memref<128x8xf32, #tpu.memory_space<vmem>>, %arg5: memref<128x128xbf16, #tpu.memory_space<vmem>>, %arg6: memref<8x128xf32, #tpu.memory_space<vmem>>, %arg7: memref<128x8xf32, #tpu.memory_space<vmem>>) attributes {dimension_semantics = [#tpu.dimension_semantics<parallel>], iteration_bounds = array<i64: 2>, scalar_prefetch = 0 : i64, scratch_operands = 0 : i64, tpu.core_type = #tpu.core_type<tc>, window_params = [{transform_indices = @transform_0, window_bounds = array<i64: 128, 16>}, {pipeline_mode = #tpu.pipeline_mode<synchronous>, transform_indices = @transform_1, window_bounds = array<i64: 16, 128>}, {pipeline_mode = #tpu.pipeline_mode<synchronous>, transform_indices = @transform_2, window_bounds = array<i64: 8, 128>}, {pipeline_mode = #tpu.pipeline_mode<synchronous>, transform_indices = @transform_3, window_bounds = array<i64: 128, 8>}, {transform_indices = @transform_4, window_bounds = array<i64: 128, 128>}, {transform_indices = @transform_5, window_bounds = array<i64: 8, 128>}, {transform_indices = @transform_6, window_bounds = array<i64: 128, 8>}]} {
    %c0 = arith.constant 0 : index
    %c0_0 = arith.constant 0 : index
    %0 = vector.load %arg1[%c0, %c0_0] : memref<128x16xf32, #tpu.memory_space<vmem>>, vector<128x16xf32>
    %c0_1 = arith.constant 0 : index
    %c0_2 = arith.constant 0 : index
    %1 = vector.load %arg2[%c0_1, %c0_2] : memref<16x128xf32, #tpu.memory_space<vmem>>, vector<16x128xf32>
    %cst = arith.constant dense<0.000000e+00> : vector<128x128xf32>
    %2 = tpu.matmul %0, %1, %cst {dimension_numbers = #tpu.dot_dimension_numbers<[1], [0], [0], [1], [0, 0, 1, 1], [], []>} : vector<128x16xf32>, vector<16x128xf32>, vector<128x128xf32> -> vector<128x128xf32>
    %c0_3 = arith.constant 0 : index
    %c0_4 = arith.constant 0 : index
    %3 = vector.load %arg3[%c0_3, %c0_4] : memref<8x128xf32, #tpu.memory_space<vmem>>, vector<8x128xf32>
    %cst_5 = arith.constant dense<0.000000e+00> : vector<8x128xf32>
    %4 = tpu.matmul %3, %2, %cst_5 {dimension_numbers = #tpu.dot_dimension_numbers<[1], [1], [0], [0], [0, 0, 1, 0], [], []>} : vector<8x128xf32>, vector<128x128xf32>, vector<8x128xf32> -> vector<8x128xf32>
    %c0_6 = arith.constant 0 : index
    %c0_7 = arith.constant 0 : index
    %5 = vector.load %arg6[%c0_6, %c0_7] : memref<8x128xf32, #tpu.memory_space<vmem>>, vector<8x128xf32>
    tpu.vector_store %arg6[%c0_6, %c0_7], %4 {strides = array<i32>} : memref<8x128xf32, #tpu.memory_space<vmem>>, vector<8x128xf32>,
    %c0_8 = arith.constant 0 : index
    %c0_9 = arith.constant 0 : index
    %6 = vector.load %arg4[%c0_8, %c0_9] : memref<128x8xf32, #tpu.memory_space<vmem>>, vector<128x8xf32>
    %cst_10 = arith.constant dense<0.000000e+00> : vector<128x8xf32>
    %7 = tpu.matmul %2, %6, %cst_10 {dimension_numbers = #tpu.dot_dimension_numbers<[1], [0], [0], [1], [0, 0, 1, 1], [], []>} : vector<128x128xf32>, vector<128x8xf32>, vector<128x8xf32> -> vector<128x8xf32>
    %c0_11 = arith.constant 0 : index
    %c0_12 = arith.constant 0 : index
    %8 = vector.load %arg7[%c0_11, %c0_12] : memref<128x8xf32, #tpu.memory_space<vmem>>, vector<128x8xf32>
    tpu.vector_store %arg7[%c0_11, %c0_12], %7 {strides = array<i32>} : memref<128x8xf32, #tpu.memory_space<vmem>>, vector<128x8xf32>,
    %9 = arith.truncf %2 : vector<128x128xf32> to vector<128x128xbf16>
    %c0_13 = arith.constant 0 : index
    %c0_14 = arith.constant 0 : index
    %10 = vector.load %arg5[%c0_13, %c0_14] : memref<128x128xbf16, #tpu.memory_space<vmem>>, vector<128x128xbf16>
    tpu.vector_store %arg5[%c0_13, %c0_14], %9 {strides = array<i32>} : memref<128x128xbf16, #tpu.memory_space<vmem>>, vector<128x128xbf16>,
    return
  }
  func.func @transform_0(%arg0: i32) -> (i32, i32) {
    %c0_i32 = arith.constant 0 : i32
    %c0_i32_0 = arith.constant 0 : i32
    return %arg0, %c0_i32 : i32, i32
  }
  func.func @transform_1(%arg0: i32) -> (i32, i32) {
    %c0_i32 = arith.constant 0 : i32
    %c0_i32_0 = arith.constant 0 : i32
    %c0_i32_1 = arith.constant 0 : i32
    return %c0_i32, %c0_i32_0 : i32, i32
  }
  func.func @transform_2(%arg0: i32) -> (i32, i32) {
    %c0_i32 = arith.constant 0 : i32
    %c0_i32_0 = arith.constant 0 : i32
    %c0_i32_1 = arith.constant 0 : i32
    return %c0_i32, %c0_i32_0 : i32, i32
  }
  func.func @transform_3(%arg0: i32) -> (i32, i32) {
    %c0_i32 = arith.constant 0 : i32
    %c0_i32_0 = arith.constant 0 : i32
    %c0_i32_1 = arith.constant 0 : i32
    return %c0_i32, %c0_i32_0 : i32, i32
  }
  func.func @transform_4(%arg0: i32) -> (i32, i32) {
    %c0_i32 = arith.constant 0 : i32
    %c0_i32_0 = arith.constant 0 : i32
    return %arg0, %c0_i32 : i32, i32
  }
  func.func @transform_5(%arg0: i32) -> (i32, i32) {
    %c0_i32 = arith.constant 0 : i32
    %c0_i32_0 = arith.constant 0 : i32
    return %c0_i32, %arg0 : i32, i32
  }
  func.func @transform_6(%arg0: i32) -> (i32, i32) {
    %c0_i32 = arith.constant 0 : i32
    %c0_i32_0 = arith.constant 0 : i32
    return %arg0, %c0_i32 : i32, i32
  }
}

</mosaic_0001>

<llo_original>
// kernel: tpu_custom_call.1
$region0: #{tpu_custom_call.1}
  #allocation0 [shape = 'u32[]', space=smem, size = 0x4, offset = 0x4, fixed_abs, tag = 'smem constant byte address 0x4 - core index']
  #allocation1 [shape = 'u32[144,128]{1,0:T(1,128)}', space=vmem, size = 0x12000, scoped, tag = 'internal scratch']
  %s0 = inlined_call_operand.vmem [shape: f32[256,16], index: 0, kind: input, shape index: {}]
  %s1 = inlined_call_operand.vmem [shape: f32[16,128], index: 1, kind: input, shape index: {}]
  %s2 = inlined_call_operand.vmem [shape: f32[8,128], index: 2, kind: input, shape index: {}]
  %s3 = inlined_call_operand.vmem [shape: f32[128,8], index: 3, kind: input, shape index: {}]
  %s4 = inlined_call_operand.hbm [shape: bf16[256,128], index: 4, kind: output, shape index: {0}]
  %s5 = inlined_call_operand.hbm [shape: f32[8,256], index: 5, kind: output, shape index: {1}]
  %s6 = inlined_call_operand.vmem [shape: f32[256,8], index: 6, kind: output, shape index: {2}]
  %7 = xla_tuple %s4, %s5, %s6
  %s8 = sld [smem:[#allocation0]]
  $region65: #{tpu_custom_call.1} parent=0
    _
  %s10 = ssub.s32 1, %s8
  %s11 = scalar_select 0, %s10, %s8
  $region1: #{tpu_custom_call.1} parent=0
    #allocation2 [shape = 'u8[65536]{0}', space=vmem, size = 0x10000, scoped, tag = 'output window, operand 0']
    #allocation3 [shape = 's32[2]{0}', space=sflag, size = 0x8, scoped, tag = 'scoped memory for tpu_custom_call.1']
    #allocation4 [shape = 'u8[8192]{0}', space=vmem, size = 0x2000, scoped, tag = 'output window, operand 1']
    #allocation5 [shape = 's32[2]{0}', space=sflag, size = 0x8, scoped, tag = 'scoped memory for tpu_custom_call.1']
    %12 = vsyncpa [#allocation3], 0
    %s13 = scalar_lea.sflag [#allocation3], 1
    %14 = vsyncpa %s13, 0
    %15 = vsyncpa [#allocation5], 0
    %s16 = scalar_lea.sflag [#allocation5], 1
    %17 = vsyncpa %s16, 0
    loop: start=0, step=1, limit=4
    $region2: #{tpu_custom_call.1} parent=1 // loop_pre_header
      _
    $region3: #{tpu_custom_call.1} parent=1 // loop_header
      %s19 = sphi 0, %s23
      %p20 = scmp.ge.s32.totalorder %s19, 4
      %s29 = sphi 0, %s31
      %s32 = sphi 0, %s29
      %s33 = sphi 0, %s32
      %s49 = sphi 0, %s33
      %s53 = sphi 0, %s53
      %s55 = sphi 0, %s53
      %s56 = sphi 0, %s55
      %s70 = sphi 0, %s56
      %s74 = sphi 0, %s74
      %s76 = sphi 0, %s74
      %s77 = sphi 0, %s76
      %s91 = sphi 0, %s77
      %s95 = sphi 0, %s95
      %s97 = sphi 0, %s95
      %s98 = sphi 0, %s97
      %s112 = sphi 0, %s98
      %s118 = sphi 0, %s120
      %s121 = sphi 0, %s118
      %s122 = sphi 0, %s121
      %s138 = sphi 0, %s122
      %s144 = sphi 0, %s146
      %s147 = sphi 0, %s144
      %s148 = sphi 0, %s147
      %s164 = sphi 0, %s148
      %s170 = sphi 0, %s172
      %s173 = sphi 0, %s170
      %s174 = sphi 0, %s173
      %s190 = sphi 0, %s174
    $region4: #{tpu_custom_call.1} parent=1 // loop_header_branch
      %22 = sbr.rel (%p20) target = $region8
    $region5: #{tpu_custom_call.1} parent=1 // loop_body
      %s24 = ssub.s32 %s19, 1
      %s25 = ssub.s32 %s19, 2
      %s26 = sadd.s32 %s19, 1
      %s27 = ssub.s32 %s19, %s26
      %p28 = scmp.eq.s32.totalorder %s27, 0
      %s30 = sadd.s32 %s29, 1
      %s31 = scalar_select %p28, %s29, %s30
      %p34 = pneg %p28
      %p35 = scmp.eq.s32.totalorder %s19, 1
      %p36 = por %p34, %p35
      %p37 = scmp.ne.s32.totalorder %s29, %s32
      %p38 = scmp.eq.s32.totalorder %s19, 0
      %p39 = por %p37, %p38
      %p40 = scmp.ne.s32.totalorder %s29, %s32
      %p41 = scmp.eq.s32.totalorder %s24, 1
      %p42 = por %p40, %p41
      %p43 = scmp.ne.s32.totalorder %s32, %s33
      %p44 = scmp.eq.s32.totalorder %s24, 0
      %p45 = por %p43, %p44
      %p46 = scmp.ne.s32.totalorder %s32, %s33
      %p47 = scmp.eq.s32.totalorder %s25, 1
      %p48 = por %p46, %p47
      %p50 = scmp.ne.s32.totalorder %s33, %s49
      %p51 = scmp.eq.s32.totalorder %s25, 0
      %p52 = por %p50, %p51
      %s54 = sadd.s32 %s53, 1
      %p57 = scmp.eq.s32.totalorder %s19, 1
      %p58 = scmp.ne.s32.totalorder %s53, %s55
      %p59 = scmp.eq.s32.totalorder %s19, 0
      %p60 = por %p58, %p59
      %p61 = scmp.ne.s32.totalorder %s53, %s55
      %p62 = scmp.eq.s32.totalorder %s24, 1
      %p63 = por %p61, %p62
      %p64 = scmp.ne.s32.totalorder %s55, %s56
      %p65 = scmp.eq.s32.totalorder %s24, 0
      %p66 = por %p64, %p65
      %p67 = scmp.ne.s32.totalorder %s55, %s56
      %p68 = scmp.eq.s32.totalorder %s25, 1
      %p69 = por %p67, %p68
      %p71 = scmp.ne.s32.totalorder %s56, %s70
      %p72 = scmp.eq.s32.totalorder %s25, 0
      %p73 = por %p71, %p72
      %s75 = sadd.s32 %s74, 1
      %p78 = scmp.eq.s32.totalorder %s19, 1
      %p79 = scmp.ne.s32.totalorder %s74, %s76
      %p80 = scmp.eq.s32.totalorder %s19, 0
      %p81 = por %p79, %p80
      %p82 = scmp.ne.s32.totalorder %s74, %s76
      %p83 = scmp.eq.s32.totalorder %s24, 1
      %p84 = por %p82, %p83
      %p85 = scmp.ne.s32.totalorder %s76, %s77
      %p86 = scmp.eq.s32.totalorder %s24, 0
      %p87 = por %p85, %p86
      %p88 = scmp.ne.s32.totalorder %s76, %s77
      %p89 = scmp.eq.s32.totalorder %s25, 1
      %p90 = por %p88, %p89
      %p92 = scmp.ne.s32.totalorder %s77, %s91
      %p93 = scmp.eq.s32.totalorder %s25, 0
      %p94 = por %p92, %p93
      %s96 = sadd.s32 %s95, 1
      %p99 = scmp.eq.s32.totalorder %s19, 1
      %p100 = scmp.ne.s32.totalorder %s95, %s97
      %p101 = scmp.eq.s32.totalorder %s19, 0
      %p102 = por %p100, %p101
      %p103 = scmp.ne.s32.totalorder %s95, %s97
      %p104 = scmp.eq.s32.totalorder %s24, 1
      %p105 = por %p103, %p104
      %p106 = scmp.ne.s32.totalorder %s97, %s98
      %p107 = scmp.eq.s32.totalorder %s24, 0
      %p108 = por %p106, %p107
      %p109 = scmp.ne.s32.totalorder %s97, %s98
      %p110 = scmp.eq.s32.totalorder %s25, 1
      %p111 = por %p109, %p110
      %p113 = scmp.ne.s32.totalorder %s98, %s112
      %p114 = scmp.eq.s32.totalorder %s25, 0
      %p115 = por %p113, %p114
      %s116 = ssub.s32 %s19, %s26
      %p117 = scmp.eq.s32.totalorder %s116, 0
      %s119 = sadd.s32 %s118, 1
      %s120 = scalar_select %p117, %s118, %s119
      %p123 = pneg %p117
      %p124 = scmp.eq.s32.totalorder %s19, 1
      %p125 = por %p123, %p124
      %p126 = scmp.ne.s32.totalorder %s118, %s121
      %p127 = scmp.eq.s32.totalorder %s19, 0
      %p128 = por %p126, %p127
      %p129 = scmp.ne.s32.totalorder %s118, %s121
      %p130 = scmp.eq.s32.totalorder %s24, 1
      %p131 = por %p129, %p130
      %p132 = scmp.ne.s32.totalorder %s121, %s122
      %p133 = scmp.eq.s32.totalorder %s24, 0
      %p134 = por %p132, %p133
      %p135 = scmp.ne.s32.totalorder %s121, %s122
      %p136 = scmp.eq.s32.totalorder %s25, 1
      %p137 = por %p135, %p136
      %p139 = scmp.ne.s32.totalorder %s122, %s138
      %p140 = scmp.eq.s32.totalorder %s25, 0
      %p141 = por %p139, %p140
      %s142 = ssub.s32 %s19, %s26
      %p143 = scmp.eq.s32.totalorder %s142, 0
      %s145 = sadd.s32 %s144, 1
      %s146 = scalar_select %p143, %s144, %s145
      %p149 = pneg %p143
      %p150 = scmp.eq.s32.totalorder %s19, 1
      %p151 = por %p149, %p150
      %p152 = scmp.ne.s32.totalorder %s144, %s147
      %p153 = scmp.eq.s32.totalorder %s19, 0
      %p154 = por %p152, %p153
      %p155 = scmp.ne.s32.totalorder %s144, %s147
      %p156 = scmp.eq.s32.totalorder %s24, 1
      %p157 = por %p155, %p156
      %p158 = scmp.ne.s32.totalorder %s147, %s148
      %p159 = scmp.eq.s32.totalorder %s24, 0
      %p160 = por %p158, %p159
      %p161 = scmp.ne.s32.totalorder %s147, %s148
      %p162 = scmp.eq.s32.totalorder %s25, 1
      %p163 = por %p161, %p162
      %p165 = scmp.ne.s32.totalorder %s148, %s164
      %p166 = scmp.eq.s32.totalorder %s25, 0
      %p167 = por %p165, %p166
      %s168 = ssub.s32 %s19, %s26
      %p169 = scmp.eq.s32.totalorder %s168, 0
      %s171 = sadd.s32 %s170, 1
      %s172 = scalar_select %p169, %s170, %s171
      %p175 = pneg %p169
      %p176 = scmp.eq.s32.totalorder %s19, 1
      %p177 = por %p175, %p176
      %p178 = scmp.ne.s32.totalorder %s170, %s173
      %p179 = scmp.eq.s32.totalorder %s19, 0
      %p180 = por %p178, %p179
      %p181 = scmp.ne.s32.totalorder %s170, %s173
      %p182 = scmp.eq.s32.totalorder %s24, 1
      %p183 = por %p181, %p182
      %p184 = scmp.ne.s32.totalorder %s173, %s174
      %p185 = scmp.eq.s32.totalorder %s24, 0
      %p186 = por %p184, %p185
      %p187 = scmp.ne.s32.totalorder %s173, %s174
      %p188 = scmp.eq.s32.totalorder %s25, 1
      %p189 = por %p187, %p188
      %p191 = scmp.ne.s32.totalorder %s174, %s190
      %p192 = scmp.eq.s32.totalorder %s25, 0
      %p193 = por %p191, %p192
      %p194 = scmp.le.s32.totalorder 1, %s19
      %p195 = scmp.lt.s32.totalorder %s19, 3
      %p196 = pnand %p194, %p195
      %p197 = pneg %p196
      // Predicated region
      $region9: #{tpu_custom_call.1} parent=5 // pred_check
        _
      $region10: #{tpu_custom_call.1} parent=5 // pred_check_branch
        %199 = sbr.rel (%p196) target = $region12
      $region11: #{tpu_custom_call.1} parent=5 // pred_region
        %s200 = ssub.s32 %s19, 1
        // Predicated region
        $region13: #{tpu_custom_call.1} parent=11 // pred_check
          %p201 = pneg %p66
        $region14: #{tpu_custom_call.1} parent=11 // pred_check_branch
          %203 = sbr.rel (%p201) target = $region16
        $region15: #{tpu_custom_call.1} parent=11 // pred_region
          _
        $region16: #{tpu_custom_call.1} parent=11 // pred_fallthru
          _
        // Predicated region
        $region17: #{tpu_custom_call.1} parent=11 // pred_check
          %p204 = pneg %p87
        $region18: #{tpu_custom_call.1} parent=11 // pred_check_branch
          %206 = sbr.rel (%p204) target = $region20
        $region19: #{tpu_custom_call.1} parent=11 // pred_region
          _
        $region20: #{tpu_custom_call.1} parent=11 // pred_fallthru
          _
        // Predicated region
        $region21: #{tpu_custom_call.1} parent=11 // pred_check
          %p207 = pneg %p108
        $region22: #{tpu_custom_call.1} parent=11 // pred_check_branch
          %209 = sbr.rel (%p207) target = $region24
        $region23: #{tpu_custom_call.1} parent=11 // pred_region
          _
        $region24: #{tpu_custom_call.1} parent=11 // pred_fallthru
          _
      $region12: #{tpu_custom_call.1} parent=5 // pred_fallthru
        _
      %p210 = scmp.lt.s32.totalorder %s19, 2
      // Predicated region
      $region25: #{tpu_custom_call.1} parent=5 // pred_check
        %p211 = pneg %p210
      $region26: #{tpu_custom_call.1} parent=5 // pred_check_branch
        %213 = sbr.rel (%p211) target = $region28
      $region27: #{tpu_custom_call.1} parent=5 // pred_region
        // Predicated region
        $region29: #{tpu_custom_call.1} parent=27 // pred_check
          %p214 = pneg %p39
        $region30: #{tpu_custom_call.1} parent=27 // pred_check_branch
          %216 = sbr.rel (%p214) target = $region32
        $region31: #{tpu_custom_call.1} parent=27 // pred_region
          %s217 = smul.u32 16, %s19
          %p218 = scmp.lt.s32.totalorder %s217, 31
          %s219 = scalar_select %p218, %s217, 31
          %s220 = smul.addr %s219, 8
          %s221 = scalar_lea.vmem %s0, %s220
          %s222 = smul.u32 16, %s19
        $region32: #{tpu_custom_call.1} parent=27 // pred_fallthru
          _
      $region28: #{tpu_custom_call.1} parent=5 // pred_fallthru
        _
      %p223 = scmp.le.s32.totalorder 1, %s19
      %p224 = scmp.lt.s32.totalorder %s19, 3
      %p225 = pnand %p223, %p224
      %p226 = pneg %p225
      // Predicated region
      $region33: #{tpu_custom_call.1} parent=5 // pred_check
        _
      $region34: #{tpu_custom_call.1} parent=5 // pred_check_branch
        %228 = sbr.rel (%p225) target = $region36
      $region35: #{tpu_custom_call.1} parent=5 // pred_region
        %s229 = ssub.s32 %s19, 1
        %s230 = smul.u32 16, %s24
        %p231 = scmp.lt.s32.totalorder %s230, 31
        %s232 = scalar_select %p231, %s230, 31
        %s233 = smul.addr %s232, 8
        %s234 = scalar_lea.vmem %s0, %s233
        %p235 = pneg %p45
        %p236 = pneg %p42
        %p237 = pneg %p66
        %p238 = pneg %p63
        %p239 = pneg %p87
        %p240 = pneg %p84
        %p241 = pneg %p108
        %p242 = pneg %p105
        %p243 = pneg %p134
        %p244 = pneg %p131
        %s245 = sand.u32 %s121, 1
        %s246 = scalar_lea.sflag [#allocation3], %s245
        %s247 = sand.u32 %s121, 1
        %s248 = smul.addr %s247, 64
        %s249 = scalar_lea.vmem [#allocation2], %s248
        %p250 = pneg %p160
        %p251 = pneg %p157
        %s252 = sand.u32 %s147, 1
        %s253 = scalar_lea.sflag [#allocation5], %s252
        %s254 = sand.u32 %s147, 1
        %s255 = smul.addr %s254, 8
        %s256 = scalar_lea.vmem [#allocation4], %s255
        %p257 = pneg %p186
        %p258 = pneg %p183
        %s259 = smul.u32 16, %s24
        %p260 = scmp.lt.s32.totalorder %s259, 31
        %s261 = scalar_select %p260, %s259, 31
        %s262 = smul.addr %s261, 8
        %s263 = scalar_lea.vmem %s6, %s262
        %s264 = smul.u32 16, %s24
        %p265 = scmp.lt.s32.totalorder %s264, 31
        %s266 = scalar_select %p265, %s264, 31
        %s267 = smul.addr %s266, 8
        %s268 = scalar_lea.vmem %s0, %s267
        %s269 = smul.u32 16, %s24
        %s270 = smul.u32 16, %s24
        %s271 = smul.u32 16, %s24
        %p272 = scmp.lt.s32.totalorder %s271, 31
        %s273 = scalar_select %p272, %s271, 31
        %s274 = smul.addr %s273, 8
        %s275 = scalar_lea.vmem %s6, %s274
        %s276 = smul.u32 16, %s24
        %v277 = vld [vmem:[%s268] sm:$0xff]
        %v278 = vld [vmem:[%s268 + $0x8] sm:$0xff]
        %v279 = vld [vmem:[%s268 + $0x10] sm:$0xff]
        %v280 = vld [vmem:[%s268 + $0x18] sm:$0xff]
        %v281 = vld [vmem:[%s268 + $0x20] sm:$0xff]
        %v282 = vld [vmem:[%s268 + $0x28] sm:$0xff]
        %v283 = vld [vmem:[%s268 + $0x30] sm:$0xff]
        %v284 = vld [vmem:[%s268 + $0x38] sm:$0xff]
        %v285 = vld [vmem:[%s268 + $0x40] sm:$0xff]
        %v286 = vld [vmem:[%s268 + $0x48] sm:$0xff]
        %v287 = vld [vmem:[%s268 + $0x50] sm:$0xff]
        %v288 = vld [vmem:[%s268 + $0x58] sm:$0xff]
        %v289 = vld [vmem:[%s268 + $0x60] sm:$0xff]
        %v290 = vld [vmem:[%s268 + $0x68] sm:$0xff]
        %v291 = vld [vmem:[%s268 + $0x70] sm:$0xff]
        %v292 = vld [vmem:[%s268 + $0x78] sm:$0xff]
        %v293 = vld [vmem:[%s1] sm:$0xff]
        %v294 = vld [vmem:[%s1 + $0x8] sm:$0xff]
        %vm295 = vcmask 130048
        %v297 = vsel %vm295, %v277, 0
        %v300 = vsel %vm295, %v278, 0
        %v303 = vsel %vm295, %v279, 0
        %v306 = vsel %vm295, %v280, 0
        %v309 = vsel %vm295, %v281, 0
        %v312 = vsel %vm295, %v282, 0
        %v315 = vsel %vm295, %v283, 0
        %v318 = vsel %vm295, %v284, 0
        %v321 = vsel %vm295, %v285, 0
        %v324 = vsel %vm295, %v286, 0
        %v327 = vsel %vm295, %v287, 0
        %v330 = vsel %vm295, %v288, 0
        %v333 = vsel %vm295, %v289, 0
        %v336 = vsel %vm295, %v290, 0
        %v339 = vsel %vm295, %v291, 0
        %v342 = vsel %vm295, %v292, 0
        %344 = vmatprep.subr.mxu0 0.0
        %345 = vmatpush1.msra.mxu0 %v293
        %346 = vmatprep.subr.mxu0 0.0
        %347 = vmatpush1.msra.mxu0 %v294
        %348 = vmatprep.subr.mxu0 0.0
        %349 = vmatpush1.msra.mxu0 0.0
        %350 = vmatprep.subr.mxu0 0.0
        %351 = vmatpush1.msra.mxu0 0.0
        %352 = vmatprep.subr.mxu0 0.0
        %353 = vmatpush1.msra.mxu0 0.0
        %354 = vmatprep.subr.mxu0 0.0
        %355 = vmatpush1.msra.mxu0 0.0
        %356 = vmatprep.subr.mxu0 0.0
        %357 = vmatpush1.msra.mxu0 0.0
        %358 = vmatprep.subr.mxu0 0.0
        %359 = vmatpush1.msra.mxu0 0.0
        %360 = vmatprep.subr.mxu0 0.0
        %361 = vmatpush1.msra.mxu0 0.0
        %362 = vmatprep.subr.mxu0 0.0
        %363 = vmatpush1.msra.mxu0 0.0
        %364 = vmatprep.subr.mxu0 0.0
        %365 = vmatpush1.msra.mxu0 0.0
        %366 = vmatprep.subr.mxu0 0.0
        %367 = vmatpush1.msra.mxu0 0.0
        %368 = vmatprep.subr.mxu0 0.0
        %369 = vmatpush1.msra.mxu0 0.0
        %370 = vmatprep.subr.mxu0 0.0
        %371 = vmatpush1.msra.mxu0 0.0
        %372 = vmatprep.subr.mxu0 0.0
        %373 = vmatpush1.msra.mxu0 0.0
        %374 = vmatprep.subr.mxu0 0.0
        %375 = vmatpush1.msra.mxu0 0.0
        %376 = vmatprep.subr.mxu0 0.0
        %377 = vmatpush1.msra.mxu0 0.0
        %378 = vmatprep.subr.mxu0 0.0
        %379 = vmatpush1.msra.mxu0 0.0
        %380 = vmatprep.subr.mxu0 0.0
        %381 = vmatpush1.msra.mxu0 0.0
        %382 = vmatprep.subr.mxu0 0.0
        %383 = vmatpush1.msra.mxu0 0.0
        %384 = vmatprep.subr.mxu0 0.0
        %385 = vmatpush1.msra.mxu0 0.0
        %386 = vmatprep.subr.mxu0 0.0
        %387 = vmatpush1.msra.mxu0 0.0
        %388 = vmatprep.subr.mxu0 0.0
        %389 = vmatpush1.msra.mxu0 0.0
        %390 = vmatprep.subr.mxu0 0.0
        %391 = vmatpush1.msra.mxu0 0.0
        %392 = vmatprep.subr.mxu0 0.0
        %393 = vmatpush1.msra.mxu0 0.0
        %394 = vmatprep.subr.mxu0 0.0
        %395 = vmatpush1.msra.mxu0 0.0
        %396 = vmatprep.subr.mxu0 0.0
        %397 = vmatpush1.msra.mxu0 0.0
        %398 = vmatprep.subr.mxu0 0.0
        %399 = vmatpush1.msra.mxu0 0.0
        %400 = vmatprep.subr.mxu0 0.0
        %401 = vmatpush1.msra.mxu0 0.0
        %402 = vmatprep.subr.mxu0 0.0
        %403 = vmatpush1.msra.mxu0 0.0
        %404 = vmatprep.subr.mxu0 0.0
        %405 = vmatpush1.msra.mxu0 0.0
        %406 = vmatprep.subr.mxu0 0.0
        %407 = vmatpush1.msra.mxu0 0.0
        %408 = vmatprep.mubr.f32.mxu0 0.0
        %409 = vmatmul.mubr.f32.gmra.mrb[0].mxu0 %v297
        %v410 = vpop.f32.mrb[0].mxu0
        %v411 = vadd.f32 0.0, %v410
        %v412 = vpop.f32.mrb[0].mxu0
        %413 = vmatprep.mubr.f32.mxu0 0.0
        %414 = vmatmul.mubr.f32.gmra.mrb[0].mxu0 %v300
        %v415 = vpop.f32.mrb[0].mxu0
        %v416 = vadd.f32 0.0, %v415
        %v417 = vpop.f32.mrb[0].mxu0
        %418 = vmatprep.mubr.f32.mxu0 0.0
        %419 = vmatmul.mubr.f32.gmra.mrb[0].mxu0 %v303
        %v420 = vpop.f32.mrb[0].mxu0
        %v421 = vadd.f32 0.0, %v420
        %v422 = vpop.f32.mrb[0].mxu0
        %423 = vmatprep.mubr.f32.mxu0 0.0
        %424 = vmatmul.mubr.f32.gmra.mrb[0].mxu0 %v306
        %v425 = vpop.f32.mrb[0].mxu0
        %v426 = vadd.f32 0.0, %v425
        %v427 = vpop.f32.mrb[0].mxu0
        %428 = vmatprep.mubr.f32.mxu0 0.0
        %429 = vmatmul.mubr.f32.gmra.mrb[0].mxu0 %v309
        %v430 = vpop.f32.mrb[0].mxu0
        %v431 = vadd.f32 0.0, %v430
        %v432 = vpop.f32.mrb[0].mxu0
        %433 = vmatprep.mubr.f32.mxu0 0.0
        %434 = vmatmul.mubr.f32.gmra.mrb[0].mxu0 %v312
        %v435 = vpop.f32.mrb[0].mxu0
        %v436 = vadd.f32 0.0, %v435
        %v437 = vpop.f32.mrb[0].mxu0
        %438 = vmatprep.mubr.f32.mxu0 0.0
        %439 = vmatmul.mubr.f32.gmra.mrb[0].mxu0 %v315
        %v440 = vpop.f32.mrb[0].mxu0
        %v441 = vadd.f32 0.0, %v440
        %v442 = vpop.f32.mrb[0].mxu0
        %443 = vmatprep.mubr.f32.mxu0 0.0
        %444 = vmatmul.mubr.f32.gmra.mrb[0].mxu0 %v318
        %v445 = vpop.f32.mrb[0].mxu0
        %v446 = vadd.f32 0.0, %v445
        %v447 = vpop.f32.mrb[0].mxu0
        %448 = vmatprep.mubr.f32.mxu0 0.0
        %449 = vmatmul.mubr.f32.gmra.mrb[0].mxu0 %v321
        %v450 = vpop.f32.mrb[0].mxu0
        %v451 = vadd.f32 0.0, %v450
        %v452 = vpop.f32.mrb[0].mxu0
        %453 = vmatprep.mubr.f32.mxu0 0.0
        %454 = vmatmul.mubr.f32.gmra.mrb[0].mxu0 %v324
        %v455 = vpop.f32.mrb[0].mxu0
        %v456 = vadd.f32 0.0, %v455
        %v457 = vpop.f32.mrb[0].mxu0
        %458 = vmatprep.mubr.f32.mxu0 0.0
        %459 = vmatmul.mubr.f32.gmra.mrb[0].mxu0 %v327
        %v460 = vpop.f32.mrb[0].mxu0
        %v461 = vadd.f32 0.0, %v460
        %v462 = vpop.f32.mrb[0].mxu0
        %463 = vmatprep.mubr.f32.mxu0 0.0
        %464 = vmatmul.mubr.f32.gmra.mrb[0].mxu0 %v330
        %v465 = vpop.f32.mrb[0].mxu0
        %v466 = vadd.f32 0.0, %v465
        %v467 = vpop.f32.mrb[0].mxu0
        %468 = vmatprep.mubr.f32.mxu0 0.0
        %469 = vmatmul.mubr.f32.gmra.mrb[0].mxu0 %v333
        %v470 = vpop.f32.mrb[0].mxu0
        %v471 = vadd.f32 0.0, %v470
        %v472 = vpop.f32.mrb[0].mxu0
        %473 = vmatprep.mubr.f32.mxu0 0.0
        %474 = vmatmul.mubr.f32.gmra.mrb[0].mxu0 %v336
        %v475 = vpop.f32.mrb[0].mxu0
        %v476 = vadd.f32 0.0, %v475
        %v477 = vpop.f32.mrb[0].mxu0
        %478 = vmatprep.mubr.f32.mxu0 0.0
        %479 = vmatmul.mubr.f32.gmra.mrb[0].mxu0 %v339
        %v480 = vpop.f32.mrb[0].mxu0
        %v481 = vadd.f32 0.0, %v480
        %v482 = vpop.f32.mrb[0].mxu0
        %483 = vmatprep.mubr.f32.mxu0 0.0
        %484 = vmatmul.mubr.f32.gmra.mrb[0].mxu0 %v342
        %v485 = vpop.f32.mrb[0].mxu0
        %v486 = vadd.f32 0.0, %v485
        %v487 = vpop.f32.mrb[0].mxu0
        %488 = vdwg.mxu0
        %v489 = vld [vmem:[%s2] sm:$0xff]
        %490 = vmatprep.subr.mxu0 0.0
        %491 = vmatpush1.xpose.msra.mxu0 %v411
        %492 = vmatprep.subr.mxu0 0.0
        %493 = vmatpush1.xpose.msra.mxu0 %v416
        %494 = vmatprep.subr.mxu0 0.0
        %495 = vmatpush1.xpose.msra.mxu0 %v421
        %496 = vmatprep.subr.mxu0 0.0
        %497 = vmatpush1.xpose.msra.mxu0 %v426
        %498 = vmatprep.subr.mxu0 0.0
        %499 = vmatpush1.xpose.msra.mxu0 %v431
        %500 = vmatprep.subr.mxu0 0.0
        %501 = vmatpush1.xpose.msra.mxu0 %v436
        %502 = vmatprep.subr.mxu0 0.0
        %503 = vmatpush1.xpose.msra.mxu0 %v441
        %504 = vmatprep.subr.mxu0 0.0
        %505 = vmatpush1.xpose.msra.mxu0 %v446
        %506 = vmatprep.subr.mxu0 0.0
        %507 = vmatpush1.xpose.msra.mxu0 %v451
        %508 = vmatprep.subr.mxu0 0.0
        %509 = vmatpush1.xpose.msra.mxu0 %v456
        %510 = vmatprep.subr.mxu0 0.0
        %511 = vmatpush1.xpose.msra.mxu0 %v461
        %512 = vmatprep.subr.mxu0 0.0
        %513 = vmatpush1.xpose.msra.mxu0 %v466
        %514 = vmatprep.subr.mxu0 0.0
        %515 = vmatpush1.xpose.msra.mxu0 %v471
        %516 = vmatprep.subr.mxu0 0.0
        %517 = vmatpush1.xpose.msra.mxu0 %v476
        %518 = vmatprep.subr.mxu0 0.0
        %519 = vmatpush1.xpose.msra.mxu0 %v481
        %520 = vmatprep.subr.mxu0 0.0
        %521 = vmatpush1.xpose.msra.mxu0 %v486
        %522 = vmatprep.subr.mxu0 0.0
        %523 = vmatpush1.xpose.msra.mxu0 0.0
        %524 = vmatprep.subr.mxu0 0.0
        %525 = vmatpush1.xpose.msra.mxu0 0.0
        %526 = vmatprep.subr.mxu0 0.0
        %527 = vmatpush1.xpose.msra.mxu0 0.0
        %528 = vmatprep.subr.mxu0 0.0
        %529 = vmatpush1.xpose.msra.mxu0 0.0
        %530 = vmatprep.subr.mxu0 0.0
        %531 = vmatpush1.xpose.msra.mxu0 0.0
        %532 = vmatprep.subr.mxu0 0.0
        %533 = vmatpush1.xpose.msra.mxu0 0.0
        %534 = vmatprep.subr.mxu0 0.0
        %535 = vmatpush1.xpose.msra.mxu0 0.0
        %536 = vmatprep.subr.mxu0 0.0
        %537 = vmatpush1.xpose.msra.mxu0 0.0
        %538 = vmatprep.subr.mxu0 0.0
        %539 = vmatpush1.xpose.msra.mxu0 0.0
        %540 = vmatprep.subr.mxu0 0.0
        %541 = vmatpush1.xpose.msra.mxu0 0.0
        %542 = vmatprep.subr.mxu0 0.0
        %543 = vmatpush1.xpose.msra.mxu0 0.0
        %544 = vmatprep.subr.mxu0 0.0
        %545 = vmatpush1.xpose.msra.mxu0 0.0
        %546 = vmatprep.subr.mxu0 0.0
        %547 = vmatpush1.xpose.msra.mxu0 0.0
        %548 = vmatprep.subr.mxu0 0.0
        %549 = vmatpush1.xpose.msra.mxu0 0.0
        %550 = vmatprep.subr.mxu0 0.0
        %551 = vmatpush1.xpose.msra.mxu0 0.0
        %552 = vmatprep.subr.mxu0 0.0
        %553 = vmatpush1.xpose.msra.mxu0 0.0
        %554 = vmatprep.mubr.f32.mxu0 0.0
        %555 = vmatmul.mubr.f32.gmra.mrb[0].mxu0 %v489
        %v556 = vpop.f32.mrb[0].mxu0
        %v557 = vadd.f32 0.0, %v556
        %v558 = vpop.f32.mrb[0].mxu0
        %559 = vdwg.mxu0
        %560 = vst [vmem:[%s256] sm:$0xff] %v557
        %v561 = vld [vmem:[%s3] sm:$0xff]
        %v562 = vld [vmem:[%s3 + $0x8] sm:$0xff]
        %v563 = vld [vmem:[%s3 + $0x10] sm:$0xff]
        %v564 = vld [vmem:[%s3 + $0x18] sm:$0xff]
        %v565 = vld [vmem:[%s3 + $0x20] sm:$0xff]
        %v566 = vld [vmem:[%s3 + $0x28] sm:$0xff]
        %v567 = vld [vmem:[%s3 + $0x30] sm:$0xff]
        %v568 = vld [vmem:[%s3 + $0x38] sm:$0xff]
        %v569 = vld [vmem:[%s3 + $0x40] sm:$0xff]
        %v570 = vld [vmem:[%s3 + $0x48] sm:$0xff]
        %v571 = vld [vmem:[%s3 + $0x50] sm:$0xff]
        %v572 = vld [vmem:[%s3 + $0x58] sm:$0xff]
        %v573 = vld [vmem:[%s3 + $0x60] sm:$0xff]
        %v574 = vld [vmem:[%s3 + $0x68] sm:$0xff]
        %v575 = vld [vmem:[%s3 + $0x70] sm:$0xff]
        %v576 = vld [vmem:[%s3 + $0x78] sm:$0xff]
        %577 = vmatprep.subr.mxu0 0.0
        %578 = vmatpush1.msra.mxu0 %v561
        %579 = vmatprep.subr.mxu0 0.0
        %580 = vmatpush1.msra.mxu0 %v562
        %581 = vmatprep.subr.mxu0 0.0
        %582 = vmatpush1.msra.mxu0 %v563
        %583 = vmatprep.subr.mxu0 0.0
        %584 = vmatpush1.msra.mxu0 %v564
        %585 = vmatprep.subr.mxu0 0.0
        %586 = vmatpush1.msra.mxu0 %v565
        %587 = vmatprep.subr.mxu0 0.0
        %588 = vmatpush1.msra.mxu0 %v566
        %589 = vmatprep.subr.mxu0 0.0
        %590 = vmatpush1.msra.mxu0 %v567
        %591 = vmatprep.subr.mxu0 0.0
        %592 = vmatpush1.msra.mxu0 %v568
        %593 = vmatprep.subr.mxu0 0.0
        %594 = vmatpush1.msra.mxu0 %v569
        %595 = vmatprep.subr.mxu0 0.0
        %596 = vmatpush1.msra.mxu0 %v570
        %597 = vmatprep.subr.mxu0 0.0
        %598 = vmatpush1.msra.mxu0 %v571
        %599 = vmatprep.subr.mxu0 0.0
        %600 = vmatpush1.msra.mxu0 %v572
        %601 = vmatprep.subr.mxu0 0.0
        %602 = vmatpush1.msra.mxu0 %v573
        %603 = vmatprep.subr.mxu0 0.0
        %604 = vmatpush1.msra.mxu0 %v574
        %605 = vmatprep.subr.mxu0 0.0
        %606 = vmatpush1.msra.mxu0 %v575
        %607 = vmatprep.subr.mxu0 0.0
        %608 = vmatpush1.msra.mxu0 %v576
        %609 = vmatprep.subr.mxu0 0.0
        %610 = vmatpush1.msra.mxu0 0.0
        %611 = vmatprep.subr.mxu0 0.0
        %612 = vmatpush1.msra.mxu0 0.0
        %613 = vmatprep.subr.mxu0 0.0
        %614 = vmatpush1.msra.mxu0 0.0
        %615 = vmatprep.subr.mxu0 0.0
        %616 = vmatpush1.msra.mxu0 0.0
        %617 = vmatprep.subr.mxu0 0.0
        %618 = vmatpush1.msra.mxu0 0.0
        %619 = vmatprep.subr.mxu0 0.0
        %620 = vmatpush1.msra.mxu0 0.0
        %621 = vmatprep.subr.mxu0 0.0
        %622 = vmatpush1.msra.mxu0 0.0
        %623 = vmatprep.subr.mxu0 0.0
        %624 = vmatpush1.msra.mxu0 0.0
        %625 = vmatprep.subr.mxu0 0.0
        %626 = vmatpush1.msra.mxu0 0.0
        %627 = vmatprep.subr.mxu0 0.0
        %628 = vmatpush1.msra.mxu0 0.0
        %629 = vmatprep.subr.mxu0 0.0
        %630 = vmatpush1.msra.mxu0 0.0
        %631 = vmatprep.subr.mxu0 0.0
        %632 = vmatpush1.msra.mxu0 0.0
        %633 = vmatprep.subr.mxu0 0.0
        %634 = vmatpush1.msra.mxu0 0.0
        %635 = vmatprep.subr.mxu0 0.0
        %636 = vmatpush1.msra.mxu0 0.0
        %637 = vmatprep.subr.mxu0 0.0
        %638 = vmatpush1.msra.mxu0 0.0
        %639 = vmatprep.subr.mxu0 0.0
        %640 = vmatpush1.msra.mxu0 0.0
        %641 = vmatprep.mubr.f32.mxu0 0.0
        %642 = vmatmul.mubr.f32.gmra.mrb[0].mxu0 %v411
        %v643 = vpop.f32.mrb[0].mxu0
        %v644 = vadd.f32 0.0, %v643
        %v645 = vpop.f32.mrb[0].mxu0
        %646 = vmatprep.mubr.f32.mxu0 0.0
        %647 = vmatmul.mubr.f32.gmra.mrb[0].mxu0 %v416
        %v648 = vpop.f32.mrb[0].mxu0
        %v649 = vadd.f32 0.0, %v648
        %v650 = vpop.f32.mrb[0].mxu0
        %651 = vmatprep.mubr.f32.mxu0 0.0
        %652 = vmatmul.mubr.f32.gmra.mrb[0].mxu0 %v421
        %v653 = vpop.f32.mrb[0].mxu0
        %v654 = vadd.f32 0.0, %v653
        %v655 = vpop.f32.mrb[0].mxu0
        %656 = vmatprep.mubr.f32.mxu0 0.0
        %657 = vmatmul.mubr.f32.gmra.mrb[0].mxu0 %v426
        %v658 = vpop.f32.mrb[0].mxu0
        %v659 = vadd.f32 0.0, %v658
        %v660 = vpop.f32.mrb[0].mxu0
        %661 = vmatprep.mubr.f32.mxu0 0.0
        %662 = vmatmul.mubr.f32.gmra.mrb[0].mxu0 %v431
        %v663 = vpop.f32.mrb[0].mxu0
        %v664 = vadd.f32 0.0, %v663
        %v665 = vpop.f32.mrb[0].mxu0
        %666 = vmatprep.mubr.f32.mxu0 0.0
        %667 = vmatmul.mubr.f32.gmra.mrb[0].mxu0 %v436
        %v668 = vpop.f32.mrb[0].mxu0
        %v669 = vadd.f32 0.0, %v668
        %v670 = vpop.f32.mrb[0].mxu0
        %671 = vmatprep.mubr.f32.mxu0 0.0
        %672 = vmatmul.mubr.f32.gmra.mrb[0].mxu0 %v441
        %v673 = vpop.f32.mrb[0].mxu0
        %v674 = vadd.f32 0.0, %v673
        %v675 = vpop.f32.mrb[0].mxu0
        %676 = vmatprep.mubr.f32.mxu0 0.0
        %677 = vmatmul.mubr.f32.gmra.mrb[0].mxu0 %v446
        %v678 = vpop.f32.mrb[0].mxu0
        %v679 = vadd.f32 0.0, %v678
        %v680 = vpop.f32.mrb[0].mxu0
        %681 = vmatprep.mubr.f32.mxu0 0.0
        %682 = vmatmul.mubr.f32.gmra.mrb[0].mxu0 %v451
        %v683 = vpop.f32.mrb[0].mxu0
        %v684 = vadd.f32 0.0, %v683
        %v685 = vpop.f32.mrb[0].mxu0
        %686 = vmatprep.mubr.f32.mxu0 0.0
        %687 = vmatmul.mubr.f32.gmra.mrb[0].mxu0 %v456
        %v688 = vpop.f32.mrb[0].mxu0
        %v689 = vadd.f32 0.0, %v688
        %v690 = vpop.f32.mrb[0].mxu0
        %691 = vmatprep.mubr.f32.mxu0 0.0
        %692 = vmatmul.mubr.f32.gmra.mrb[0].mxu0 %v461
        %v693 = vpop.f32.mrb[0].mxu0
        %v694 = vadd.f32 0.0, %v693
        %v695 = vpop.f32.mrb[0].mxu0
        %696 = vmatprep.mubr.f32.mxu0 0.0
        %697 = vmatmul.mubr.f32.gmra.mrb[0].mxu0 %v466
        %v698 = vpop.f32.mrb[0].mxu0
        %v699 = vadd.f32 0.0, %v698
        %v700 = vpop.f32.mrb[0].mxu0
        %701 = vmatprep.mubr.f32.mxu0 0.0
        %702 = vmatmul.mubr.f32.gmra.mrb[0].mxu0 %v471
        %v703 = vpop.f32.mrb[0].mxu0
        %v704 = vadd.f32 0.0, %v703
        %v705 = vpop.f32.mrb[0].mxu0
        %706 = vmatprep.mubr.f32.mxu0 0.0
        %707 = vmatmul.mubr.f32.gmra.mrb[0].mxu0 %v476
        %v708 = vpop.f32.mrb[0].mxu0
        %v709 = vadd.f32 0.0, %v708
        %v710 = vpop.f32.mrb[0].mxu0
        %711 = vmatprep.mubr.f32.mxu0 0.0
        %712 = vmatmul.mubr.f32.gmra.mrb[0].mxu0 %v481
        %v713 = vpop.f32.mrb[0].mxu0
        %v714 = vadd.f32 0.0, %v713
        %v715 = vpop.f32.mrb[0].mxu0
        %716 = vmatprep.mubr.f32.mxu0 0.0
        %717 = vmatmul.mubr.f32.gmra.mrb[0].mxu0 %v486
        %v718 = vpop.f32.mrb[0].mxu0
        %v719 = vadd.f32 0.0, %v718
        %v720 = vpop.f32.mrb[0].mxu0
        %721 = vdwg.mxu0
        %vm722 = vcmask 64512
        %723 = vst.msk [vmem:[%s275] sm:$0xff] %vm722, %v644
        %724 = vst.msk [vmem:[%s275 + $0x8] sm:$0xff] %vm722, %v649
        %725 = vst.msk [vmem:[%s275 + $0x10] sm:$0xff] %vm722, %v654
        %726 = vst.msk [vmem:[%s275 + $0x18] sm:$0xff] %vm722, %v659
        %727 = vst.msk [vmem:[%s275 + $0x20] sm:$0xff] %vm722, %v664
        %728 = vst.msk [vmem:[%s275 + $0x28] sm:$0xff] %vm722, %v669
        %729 = vst.msk [vmem:[%s275 + $0x30] sm:$0xff] %vm722, %v674
        %730 = vst.msk [vmem:[%s275 + $0x38] sm:$0xff] %vm722, %v679
        %731 = vst.msk [vmem:[%s275 + $0x40] sm:$0xff] %vm722, %v684
        %732 = vst.msk [vmem:[%s275 + $0x48] sm:$0xff] %vm722, %v689
        %733 = vst.msk [vmem:[%s275 + $0x50] sm:$0xff] %vm722, %v694
        %734 = vst.msk [vmem:[%s275 + $0x58] sm:$0xff] %vm722, %v699
        %735 = vst.msk [vmem:[%s275 + $0x60] sm:$0xff] %vm722, %v704
        %736 = vst.msk [vmem:[%s275 + $0x68] sm:$0xff] %vm722, %v709
        %737 = vst.msk [vmem:[%s275 + $0x70] sm:$0xff] %vm722, %v714
        %738 = vst.msk [vmem:[%s275 + $0x78] sm:$0xff] %vm722, %v719
        %v739 = vpack.c.bf16 %v416, %v411
        %v740 = vpack.c.bf16 %v426, %v421
        %v741 = vpack.c.bf16 %v436, %v431
        %v742 = vpack.c.bf16 %v446, %v441
        %v743 = vpack.c.bf16 %v456, %v451
        %v744 = vpack.c.bf16 %v466, %v461
        %v745 = vpack.c.bf16 %v476, %v471
        %v746 = vpack.c.bf16 %v486, %v481
        %v755 = vunpack.c.l.b16 %v739
        %v756 = vunpack.c.h.b16 %v739
        %v757 = vunpack.c.l.b16 %v740
        %v758 = vunpack.c.h.b16 %v740
        %v759 = vunpack.c.l.b16 %v741
        %v760 = vunpack.c.h.b16 %v741
        %v761 = vunpack.c.l.b16 %v742
        %v762 = vunpack.c.h.b16 %v742
        %v763 = vunpack.c.l.b16 %v743
        %v764 = vunpack.c.h.b16 %v743
        %v765 = vunpack.c.l.b16 %v744
        %v766 = vunpack.c.h.b16 %v744
        %v767 = vunpack.c.l.b16 %v745
        %v768 = vunpack.c.h.b16 %v745
        %v769 = vunpack.c.l.b16 %v746
        %v770 = vunpack.c.h.b16 %v746
        %v771 = vpack.c.b16 %v755, %v755
        %v772 = vpack.c.b16 %v756, %v756
        %v773 = vpack.c.b16 %v757, %v757
        %v774 = vpack.c.b16 %v758, %v758
        %v775 = vpack.c.b16 %v759, %v759
        %v776 = vpack.c.b16 %v760, %v760
        %v777 = vpack.c.b16 %v761, %v761
        %v778 = vpack.c.b16 %v762, %v762
        %v779 = vpack.c.b16 %v763, %v763
        %v780 = vpack.c.b16 %v764, %v764
        %v781 = vpack.c.b16 %v765, %v765
        %v782 = vpack.c.b16 %v766, %v766
        %v783 = vpack.c.b16 %v767, %v767
        %v784 = vpack.c.b16 %v768, %v768
        %v785 = vpack.c.b16 %v769, %v769
        %v786 = vpack.c.b16 %v770, %v770
        %803 = vst [vmem:[%s249] sm:$0xf] %v771
        %804 = vst [vmem:[%s249 + $0x4] sm:$0xf] %v772
        %805 = vst [vmem:[%s249 + $0x8] sm:$0xf] %v773
        %806 = vst [vmem:[%s249 + $0xc] sm:$0xf] %v774
        %807 = vst [vmem:[%s249 + $0x10] sm:$0xf] %v775
        %808 = vst [vmem:[%s249 + $0x14] sm:$0xf] %v776
        %809 = vst [vmem:[%s249 + $0x18] sm:$0xf] %v777
        %810 = vst [vmem:[%s249 + $0x1c] sm:$0xf] %v778
        %811 = vst [vmem:[%s249 + $0x20] sm:$0xf] %v779
        %812 = vst [vmem:[%s249 + $0x24] sm:$0xf] %v780
        %813 = vst [vmem:[%s249 + $0x28] sm:$0xf] %v781
        %814 = vst [vmem:[%s249 + $0x2c] sm:$0xf] %v782
        %815 = vst [vmem:[%s249 + $0x30] sm:$0xf] %v783
        %816 = vst [vmem:[%s249 + $0x34] sm:$0xf] %v784
        %817 = vst [vmem:[%s249 + $0x38] sm:$0xf] %v785
        %818 = vst [vmem:[%s249 + $0x3c] sm:$0xf] %v786
        %s819 = sand.u32 %s121, 1
        %s820 = scalar_lea.sflag [#allocation3], %s819
        %s821 = sand.u32 %s121, 1
        %s822 = smul.addr %s821, 64
        %s823 = scalar_lea.vmem [#allocation2], %s822
        %s824 = sand.u32 %s147, 1
        %s825 = scalar_lea.sflag [#allocation5], %s824
        %s826 = sand.u32 %s147, 1
        %s827 = smul.addr %s826, 8
        %s828 = scalar_lea.vmem [#allocation4], %s827
        %s829 = smul.u32 16, %s24
        %p830 = scmp.lt.s32.totalorder %s829, 31
        %s831 = scalar_select %p830, %s829, 31
        %s832 = smul.addr %s831, 8
        %s833 = scalar_lea.vmem %s6, %s832
        // Predicated region
        $region37: #{tpu_custom_call.1} parent=35 // pred_check
          %p834 = pneg %p131
        $region38: #{tpu_custom_call.1} parent=35 // pred_check_branch
          %836 = sbr.rel (%p834) target = $region40
        $region39: #{tpu_custom_call.1} parent=35 // pred_region
          %s837 = smul.u32 16, %s24
          %s839 = ssub.s32 1024, 1024
          %840 = vsyncadd %s820, %s839
          %s841 = smul.addr %s837, 64
          %s842 = scalar_lea.hbm %s4, %s841
          %s843 = sshll.u32 %s823, 4
          %s844 = int_to_ptr.vmem [resolvable:$true] %s843
          %849 = dma.vmem_to_hbm [thread:$0]  %s844, 1024, %s842, %s820, 64, 64, 4
        $region40: #{tpu_custom_call.1} parent=35 // pred_fallthru
          _
        // Predicated region
        $region41: #{tpu_custom_call.1} parent=35 // pred_check
          %p850 = pneg %p157
        $region42: #{tpu_custom_call.1} parent=35 // pred_check_branch
          %852 = sbr.rel (%p850) target = $region44
        $region43: #{tpu_custom_call.1} parent=35 // pred_region
          %s854 = ssub.s32 128, 128
          %855 = vsyncadd %s825, %s854
          %s856 = smul.addr %s24, 128
          %s857 = scalar_lea.hbm %s5, %s856
          %s859 = sshll.u32 %s828, 4
          %s860 = int_to_ptr.vmem [resolvable:$true] %s859
          %862 = dma.vmem_to_hbm [thread:$0]  %s860, 128, %s857, %s825
        $region44: #{tpu_custom_call.1} parent=35 // pred_fallthru
          _
        // Predicated region
        $region45: #{tpu_custom_call.1} parent=35 // pred_check
          %p863 = pneg %p183
        $region46: #{tpu_custom_call.1} parent=35 // pred_check_branch
          %865 = sbr.rel (%p863) target = $region48
        $region47: #{tpu_custom_call.1} parent=35 // pred_region
          %s866 = smul.u32 16, %s24
        $region48: #{tpu_custom_call.1} parent=35 // pred_fallthru
          _
      $region36: #{tpu_custom_call.1} parent=5 // pred_fallthru
        _
      %p867 = scmp.le.s32.totalorder 2, %s19
      // Predicated region
      $region49: #{tpu_custom_call.1} parent=5 // pred_check
        %p868 = pneg %p867
      $region50: #{tpu_custom_call.1} parent=5 // pred_check_branch
        %870 = sbr.rel (%p868) target = $region52
      $region51: #{tpu_custom_call.1} parent=5 // pred_region
        %s871 = ssub.s32 %s19, 2
        // Predicated region
        $region53: #{tpu_custom_call.1} parent=51 // pred_check
          %p872 = pneg %p137
        $region54: #{tpu_custom_call.1} parent=51 // pred_check_branch
          %874 = sbr.rel (%p872) target = $region56
        $region55: #{tpu_custom_call.1} parent=51 // pred_region
          %s875 = sand.u32 %s122, 1
          %s876 = scalar_lea.sflag [#allocation3], %s875
          %s877 = sand.u32 %s122, 1
          %s878 = smul.addr %s877, 64
          %s879 = scalar_lea.vmem [#allocation2], %s878
          %880 = dma.done %s876, 1024
        $region56: #{tpu_custom_call.1} parent=51 // pred_fallthru
          _
        // Predicated region
        $region57: #{tpu_custom_call.1} parent=51 // pred_check
          %p881 = pneg %p163
        $region58: #{tpu_custom_call.1} parent=51 // pred_check_branch
          %883 = sbr.rel (%p881) target = $region60
        $region59: #{tpu_custom_call.1} parent=51 // pred_region
          %s884 = sand.u32 %s148, 1
          %s885 = scalar_lea.sflag [#allocation5], %s884
          %s886 = sand.u32 %s148, 1
          %s887 = smul.addr %s886, 8
          %s888 = scalar_lea.vmem [#allocation4], %s887
          %889 = dma.done %s885, 128
        $region60: #{tpu_custom_call.1} parent=51 // pred_fallthru
          _
        // Predicated region
        $region61: #{tpu_custom_call.1} parent=51 // pred_check
          %p890 = pneg %p189
        $region62: #{tpu_custom_call.1} parent=51 // pred_check_branch
          %892 = sbr.rel (%p890) target = $region64
        $region63: #{tpu_custom_call.1} parent=51 // pred_region
          %s893 = smul.u32 16, %s25
          %p894 = scmp.lt.s32.totalorder %s893, 31
          %s895 = scalar_select %p894, %s893, 31
          %s896 = smul.addr %s895, 8
          %s897 = scalar_lea.vmem %s6, %s896
        $region64: #{tpu_custom_call.1} parent=51 // pred_fallthru
          _
      $region52: #{tpu_custom_call.1} parent=5 // pred_fallthru
        _
    $region6: #{tpu_custom_call.1} parent=1 // loop_footer
      %s23 = sadd.s32 1, %s19
    $region7: #{tpu_custom_call.1} parent=1 // loop_footer_branch
      %18 = sbr.rel target = $region3
    $region8: #{tpu_custom_call.1} parent=1 // loop_exit
      _
    %898 = vsyncpa [#allocation3], 1
    %s899 = scalar_lea.sflag [#allocation3], 1
    %900 = vsyncpa %s899, 1
    %901 = vsyncpa [#allocation5], 1
    %s902 = scalar_lea.sflag [#allocation5], 1
    %903 = vsyncpa %s902, 1

// kernel: tpu_custom_call.1
$region0: #{tpu_custom_call.1}
  #allocation0 [shape = 'u32[]', space=smem, size = 0x4, offset = 0x4, fixed_abs, tag = 'smem constant byte address 0x4 - core index']
  #allocation1 [shape = 'u32[144,128]{1,0:T(1,128)}', space=vmem, size = 0x12000, scoped, tag = 'internal scratch']
  %s0 = inlined_call_operand.vmem [shape: f32[256,16], index: 0, kind: input, shape index: {}]
  %s1 = inlined_call_operand.vmem [shape: f32[16,128], index: 1, kind: input, shape index: {}]
  %s2 = inlined_call_operand.vmem [shape: f32[8,128], index: 2, kind: input, shape index: {}]
  %s3 = inlined_call_operand.vmem [shape: f32[128,8], index: 3, kind: input, shape index: {}]
  %s4 = inlined_call_operand.hbm [shape: bf16[256,128], index: 4, kind: output, shape index: {0}]
  %s5 = inlined_call_operand.hbm [shape: f32[8,256], index: 5, kind: output, shape index: {1}]
  %s6 = inlined_call_operand.vmem [shape: f32[256,8], index: 6, kind: output, shape index: {2}]
  %7 = xla_tuple %s4, %s5, %s6
  %s8 = sld [smem:[#allocation0]]
  $region65: #{tpu_custom_call.1} parent=0
    _
  %s10 = ssub.s32 1, %s8
  %s11 = scalar_select 0, %s10, %s8
  $region1: #{tpu_custom_call.1} parent=0
    #allocation2 [shape = 'u8[65536]{0}', space=vmem, size = 0x10000, scoped, tag = 'output window, operand 0']
    #allocation3 [shape = 's32[2]{0}', space=sflag, size = 0x8, scoped, tag = 'scoped memory for tpu_custom_call.1']
    #allocation4 [shape = 'u8[8192]{0}', space=vmem, size = 0x2000, scoped, tag = 'output window, operand 1']
    #allocation5 [shape = 's32[2]{0}', space=sflag, size = 0x8, scoped, tag = 'scoped memory for tpu_custom_call.1']
    %12 = vsyncpa [#allocation3], 0
    %s13 = scalar_lea.sflag [#allocation3], 1
    %14 = vsyncpa %s13, 0
    %15 = vsyncpa [#allocation5], 0
    %s16 = scalar_lea.sflag [#allocation5], 1
    %17 = vsyncpa %s16, 0
    loop: start=0, step=1, limit=4
    $region2: #{tpu_custom_call.1} parent=1 // loop_pre_header
      _
    $region3: #{tpu_custom_call.1} parent=1 // loop_header
      %s19 = sphi 0, %s23
      %p20 = scmp.ge.s32.totalorder %s19, 4
      %s29 = sphi 0, %s31
      %s32 = sphi 0, %s29
      %s33 = sphi 0, %s32
      %s49 = sphi 0, %s33
      %s53 = sphi 0, %s53
      %s55 = sphi 0, %s53
      %s56 = sphi 0, %s55
      %s70 = sphi 0, %s56
      %s74 = sphi 0, %s74
      %s76 = sphi 0, %s74
      %s77 = sphi 0, %s76
      %s91 = sphi 0, %s77
      %s95 = sphi 0, %s95
      %s97 = sphi 0, %s95
      %s98 = sphi 0, %s97
      %s112 = sphi 0, %s98
      %s118 = sphi 0, %s120
      %s121 = sphi 0, %s118
      %s122 = sphi 0, %s121
      %s138 = sphi 0, %s122
      %s144 = sphi 0, %s146
      %s147 = sphi 0, %s144
      %s148 = sphi 0, %s147
      %s164 = sphi 0, %s148
      %s170 = sphi 0, %s172
      %s173 = sphi 0, %s170
      %s174 = sphi 0, %s173
      %s190 = sphi 0, %s174
    $region4: #{tpu_custom_call.1} parent=1 // loop_header_branch
      %22 = sbr.rel (%p20) target = $region8
    $region5: #{tpu_custom_call.1} parent=1 // loop_body
      %s24 = ssub.s32 %s19, 1
      %s25 = ssub.s32 %s19, 2
      %s26 = sadd.s32 %s19, 1
      %s27 = ssub.s32 %s19, %s26
      %p28 = scmp.eq.s32.totalorder %s27, 0
      %s30 = sadd.s32 %s29, 1
      %s31 = scalar_select %p28, %s29, %s30
      %p34 = pneg %p28
      %p35 = scmp.eq.s32.totalorder %s19, 1
      %p36 = por %p34, %p35
      %p37 = scmp.ne.s32.totalorder %s29, %s32
      %p38 = scmp.eq.s32.totalorder %s19, 0
      %p39 = por %p37, %p38
      %p40 = scmp.ne.s32.totalorder %s29, %s32
      %p41 = scmp.eq.s32.totalorder %s24, 1
      %p42 = por %p40, %p41
      %p43 = scmp.ne.s32.totalorder %s32, %s33
      %p44 = scmp.eq.s32.totalorder %s24, 0
      %p45 = por %p43, %p44
      %p46 = scmp.ne.s32.totalorder %s32, %s33
      %p47 = scmp.eq.s32.totalorder %s25, 1
      %p48 = por %p46, %p47
      %p50 = scmp.ne.s32.totalorder %s33, %s49
      %p51 = scmp.eq.s32.totalorder %s25, 0
      %p52 = por %p50, %p51
      %s54 = sadd.s32 %s53, 1
      %p57 = scmp.eq.s32.totalorder %s19, 1
      %p58 = scmp.ne.s32.totalorder %s53, %s55
      %p59 = scmp.eq.s32.totalorder %s19, 0
      %p60 = por %p58, %p59
      %p61 = scmp.ne.s32.totalorder %s53, %s55
      %p62 = scmp.eq.s32.totalorder %s24, 1
      %p63 = por %p61, %p62
      %p64 = scmp.ne.s32.totalorder %s55, %s56
      %p65 = scmp.eq.s32.totalorder %s24, 0
      %p66 = por %p64, %p65
      %p67 = scmp.ne.s32.totalorder %s55, %s56
      %p68 = scmp.eq.s32.totalorder %s25, 1
      %p69 = por %p67, %p68
      %p71 = scmp.ne.s32.totalorder %s56, %s70
      %p72 = scmp.eq.s32.totalorder %s25, 0
      %p73 = por %p71, %p72
      %s75 = sadd.s32 %s74, 1
      %p78 = scmp.eq.s32.totalorder %s19, 1
      %p79 = scmp.ne.s32.totalorder %s74, %s76
      %p80 = scmp.eq.s32.totalorder %s19, 0
      %p81 = por %p79, %p80
      %p82 = scmp.ne.s32.totalorder %s74, %s76
      %p83 = scmp.eq.s32.totalorder %s24, 1
      %p84 = por %p82, %p83
      %p85 = scmp.ne.s32.totalorder %s76, %s77
      %p86 = scmp.eq.s32.totalorder %s24, 0
      %p87 = por %p85, %p86
      %p88 = scmp.ne.s32.totalorder %s76, %s77
      %p89 = scmp.eq.s32.totalorder %s25, 1
      %p90 = por %p88, %p89
      %p92 = scmp.ne.s32.totalorder %s77, %s91
      %p93 = scmp.eq.s32.totalorder %s25, 0
      %p94 = por %p92, %p93
      %s96 = sadd.s32 %s95, 1
      %p99 = scmp.eq.s32.totalorder %s19, 1
      %p100 = scmp.ne.s32.totalorder %s95, %s97
      %p101 = scmp.eq.s32.totalorder %s19, 0
      %p102 = por %p100, %p101
      %p103 = scmp.ne.s32.totalorder %s95, %s97
      %p104 = scmp.eq.s32.totalorder %s24, 1
      %p105 = por %p103, %p104
      %p106 = scmp.ne.s32.totalorder %s97, %s98
      %p107 = scmp.eq.s32.totalorder %s24, 0
      %p108 = por %p106, %p107
      %p109 = scmp.ne.s32.totalorder %s97, %s98
      %p110 = scmp.eq.s32.totalorder %s25, 1
      %p111 = por %p109, %p110
      %p113 = scmp.ne.s32.totalorder %s98, %s112
      %p114 = scmp.eq.s32.totalorder %s25, 0
      %p115 = por %p113, %p114
      %s116 = ssub.s32 %s19, %s26
      %p117 = scmp.eq.s32.totalorder %s116, 0
      %s119 = sadd.s32 %s118, 1
      %s120 = scalar_select %p117, %s118, %s119
      %p123 = pneg %p117
      %p124 = scmp.eq.s32.totalorder %s19, 1
      %p125 = por %p123, %p124
      %p126 = scmp.ne.s32.totalorder %s118, %s121
      %p127 = scmp.eq.s32.totalorder %s19, 0
      %p128 = por %p126, %p127
      %p129 = scmp.ne.s32.totalorder %s118, %s121
      %p130 = scmp.eq.s32.totalorder %s24, 1
      %p131 = por %p129, %p130
      %p132 = scmp.ne.s32.totalorder %s121, %s122
      %p133 = scmp.eq.s32.totalorder %s24, 0
      %p134 = por %p132, %p133
      %p135 = scmp.ne.s32.totalorder %s121, %s122
      %p136 = scmp.eq.s32.totalorder %s25, 1
      %p137 = por %p135, %p136
      %p139 = scmp.ne.s32.totalorder %s122, %s138
      %p140 = scmp.eq.s32.totalorder %s25, 0
      %p141 = por %p139, %p140
      %s142 = ssub.s32 %s19, %s26
      %p143 = scmp.eq.s32.totalorder %s142, 0
      %s145 = sadd.s32 %s144, 1
      %s146 = scalar_select %p143, %s144, %s145
      %p149 = pneg %p143
      %p150 = scmp.eq.s32.totalorder %s19, 1
      %p151 = por %p149, %p150
      %p152 = scmp.ne.s32.totalorder %s144, %s147
      %p153 = scmp.eq.s32.totalorder %s19, 0
      %p154 = por %p152, %p153
      %p155 = scmp.ne.s32.totalorder %s144, %s147
      %p156 = scmp.eq.s32.totalorder %s24, 1
      %p157 = por %p155, %p156
      %p158 = scmp.ne.s32.totalorder %s147, %s148
      %p159 = scmp.eq.s32.totalorder %s24, 0
      %p160 = por %p158, %p159
      %p161 = scmp.ne.s32.totalorder %s147, %s148
      %p162 = scmp.eq.s32.totalorder %s25, 1
      %p163 = por %p161, %p162
      %p165 = scmp.ne.s32.totalorder %s148, %s164
      %p166 = scmp.eq.s32.totalorder %s25, 0
      %p167 = por %p165, %p166
      %s168 = ssub.s32 %s19, %s26
      %p169 = scmp.eq.s32.totalorder %s168, 0
      %s171 = sadd.s32 %s170, 1
      %s172 = scalar_select %p169, %s170, %s171
      %p175 = pneg %p169
      %p176 = scmp.eq.s32.totalorder %s19, 1
      %p177 = por %p175, %p176
      %p178 = scmp.ne.s32.totalorder %s170, %s173
      %p179 = scmp.eq.s32.totalorder %s19, 0
      %p180 = por %p178, %p179
      %p181 = scmp.ne.s32.totalorder %s170, %s173
      %p182 = scmp.eq.s32.totalorder %s24, 1
      %p183 = por %p181, %p182
      %p184 = scmp.ne.s32.totalorder %s173, %s174
      %p185 = scmp.eq.s32.totalorder %s24, 0
      %p186 = por %p184, %p185
      %p187 = scmp.ne.s32.totalorder %s173, %s174
      %p188 = scmp.eq.s32.totalorder %s25, 1
      %p189 = por %p187, %p188
      %p191 = scmp.ne.s32.totalorder %s174, %s190
      %p192 = scmp.eq.s32.totalorder %s25, 0
      %p193 = por %p191, %p192
      %p194 = scmp.le.s32.totalorder 1, %s19
      %p195 = scmp.lt.s32.totalorder %s19, 3
      %p196 = pnand %p194, %p195
      %p197 = pneg %p196
      // Predicated region
      $region9: #{tpu_custom_call.1} parent=5 // pred_check
        _
      $region10: #{tpu_custom_call.1} parent=5 // pred_check_branch
        %199 = sbr.rel (%p196) target = $region12
      $region11: #{tpu_custom_call.1} parent=5 // pred_region
        %s200 = ssub.s32 %s19, 1
        // Predicated region
        $region13: #{tpu_custom_call.1} parent=11 // pred_check
          %p201 = pneg %p66
        $region14: #{tpu_custom_call.1} parent=11 // pred_check_branch
          %203 = sbr.rel (%p201) target = $region16
        $region15: #{tpu_custom_call.1} parent=11 // pred_region
          _
        $region16: #{tpu_custom_call.1} parent=11 // pred_fallthru
          _
        // Predicated region
        $region17: #{tpu_custom_call.1} parent=11 // pred_check
          %p204 = pneg %p87
        $region18: #{tpu_custom_call.1} parent=11 // pred_check_branch
          %206 = sbr.rel (%p204) target = $region20
        $region19: #{tpu_custom_call.1} parent=11 // pred_region
          _
        $region20: #{tpu_custom_call.1} parent=11 // pred_fallthru
          _
        // Predicated region
        $region21: #{tpu_custom_call.1} parent=11 // pred_check
          %p207 = pneg %p108
        $region22: #{tpu_custom_call.1} parent=11 // pred_check_branch
          %209 = sbr.rel (%p207) target = $region24
        $region23: #{tpu_custom_call.1} parent=11 // pred_region
          _
        $region24: #{tpu_custom_call.1} parent=11 // pred_fallthru
          _
      $region12: #{tpu_custom_call.1} parent=5 // pred_fallthru
        _
      %p210 = scmp.lt.s32.totalorder %s19, 2
      // Predicated region
      $region25: #{tpu_custom_call.1} parent=5 // pred_check
        %p211 = pneg %p210
      $region26: #{tpu_custom_call.1} parent=5 // pred_check_branch
        %213 = sbr.rel (%p211) target = $region28
      $region27: #{tpu_custom_call.1} parent=5 // pred_region
        // Predicated region
        $region29: #{tpu_custom_call.1} parent=27 // pred_check
          %p214 = pneg %p39
        $region30: #{tpu_custom_call.1} parent=27 // pred_check_branch
          %216 = sbr.rel (%p214) target = $region32
        $region31: #{tpu_custom_call.1} parent=27 // pred_region
          %s217 = smul.u32 16, %s19
          %p218 = scmp.lt.s32.totalorder %s217, 31
          %s219 = scalar_select %p218, %s217, 31
          %s220 = smul.addr %s219, 8
          %s221 = scalar_lea.vmem %s0, %s220
          %s222 = smul.u32 16, %s19
        $region32: #{tpu_custom_call.1} parent=27 // pred_fallthru
          _
      $region28: #{tpu_custom_call.1} parent=5 // pred_fallthru
        _
      %p223 = scmp.le.s32.totalorder 1, %s19
      %p224 = scmp.lt.s32.totalorder %s19, 3
      %p225 = pnand %p223, %p224
      %p226 = pneg %p225
      // Predicated region
      $region33: #{tpu_custom_call.1} parent=5 // pred_check
        _
      $region34: #{tpu_custom_call.1} parent=5 // pred_check_branch
        %228 = sbr.rel (%p225) target = $region36
      $region35: #{tpu_custom_call.1} parent=5 // pred_region
        %s229 = ssub.s32 %s19, 1
        %s230 = smul.u32 16, %s24
        %p231 = scmp.lt.s32.totalorder %s230, 31
        %s232 = scalar_select %p231, %s230, 31
        %s233 = smul.addr %s232, 8
        %s234 = scalar_lea.vmem %s0, %s233
        %p235 = pneg %p45
        %p236 = pneg %p42
        %p237 = pneg %p66
        %p238 = pneg %p63
        %p239 = pneg %p87
        %p240 = pneg %p84
        %p241 = pneg %p108
        %p242 = pneg %p105
        %p243 = pneg %p134
        %p244 = pneg %p131
        %s245 = sand.u32 %s121, 1
        %s246 = scalar_lea.sflag [#allocation3], %s245
        %s247 = sand.u32 %s121, 1
        %s248 = smul.addr %s247, 64
        %s249 = scalar_lea.vmem [#allocation2], %s248
        %p250 = pneg %p160
        %p251 = pneg %p157
        %s252 = sand.u32 %s147, 1
        %s253 = scalar_lea.sflag [#allocation5], %s252
        %s254 = sand.u32 %s147, 1
        %s255 = smul.addr %s254, 8
        %s256 = scalar_lea.vmem [#allocation4], %s255
        %p257 = pneg %p186
        %p258 = pneg %p183
        %s259 = smul.u32 16, %s24
        %p260 = scmp.lt.s32.totalorder %s259, 31
        %s261 = scalar_select %p260, %s259, 31
        %s262 = smul.addr %s261, 8
        %s263 = scalar_lea.vmem %s6, %s262
        %s264 = smul.u32 16, %s24
        %p265 = scmp.lt.s32.totalorder %s264, 31
        %s266 = scalar_select %p265, %s264, 31
        %s267 = smul.addr %s266, 8
        %s268 = scalar_lea.vmem %s0, %s267
        %s269 = smul.u32 16, %s24
        %s270 = smul.u32 16, %s24
        %s271 = smul.u32 16, %s24
        %p272 = scmp.lt.s32.totalorder %s271, 31
        %s273 = scalar_select %p272, %s271, 31
        %s274 = smul.addr %s273, 8
        %s275 = scalar_lea.vmem %s6, %s274
        %s276 = smul.u32 16, %s24
        %v277 = vld [vmem:[%s268] sm:$0xff]
        %v278 = vld [vmem:[%s268 + $0x8] sm:$0xff]
        %v279 = vld [vmem:[%s268 + $0x10] sm:$0xff]
        %v280 = vld [vmem:[%s268 + $0x18] sm:$0xff]
        %v281 = vld [vmem:[%s268 + $0x20] sm:$0xff]
        %v282 = vld [vmem:[%s268 + $0x28] sm:$0xff]
        %v283 = vld [vmem:[%s268 + $0x30] sm:$0xff]
        %v284 = vld [vmem:[%s268 + $0x38] sm:$0xff]
        %v285 = vld [vmem:[%s268 + $0x40] sm:$0xff]
        %v286 = vld [vmem:[%s268 + $0x48] sm:$0xff]
        %v287 = vld [vmem:[%s268 + $0x50] sm:$0xff]
        %v288 = vld [vmem:[%s268 + $0x58] sm:$0xff]
        %v289 = vld [vmem:[%s268 + $0x60] sm:$0xff]
        %v290 = vld [vmem:[%s268 + $0x68] sm:$0xff]
        %v291 = vld [vmem:[%s268 + $0x70] sm:$0xff]
        %v292 = vld [vmem:[%s268 + $0x78] sm:$0xff]
        %v293 = vld [vmem:[%s1] sm:$0xff]
        %v294 = vld [vmem:[%s1 + $0x8] sm:$0xff]
        %vm295 = vcmask 130048
        %v297 = vsel %vm295, %v277, 0
        %v300 = vsel %vm295, %v278, 0
        %v303 = vsel %vm295, %v279, 0
        %v306 = vsel %vm295, %v280, 0
        %v309 = vsel %vm295, %v281, 0
        %v312 = vsel %vm295, %v282, 0
        %v315 = vsel %vm295, %v283, 0
        %v318 = vsel %vm295, %v284, 0
        %v321 = vsel %vm295, %v285, 0
        %v324 = vsel %vm295, %v286, 0
        %v327 = vsel %vm295, %v287, 0
        %v330 = vsel %vm295, %v288, 0
        %v333 = vsel %vm295, %v289, 0
        %v336 = vsel %vm295, %v290, 0
        %v339 = vsel %vm295, %v291, 0
        %v342 = vsel %vm295, %v292, 0
        %344 = vmatprep.subr.mxu0 0.0
        %345 = vmatpush1.msra.mxu0 %v293
        %346 = vmatprep.subr.mxu0 0.0
        %347 = vmatpush1.msra.mxu0 %v294
        %348 = vmatprep.subr.mxu0 0.0
        %349 = vmatpush1.msra.mxu0 0.0
        %350 = vmatprep.subr.mxu0 0.0
        %351 = vmatpush1.msra.mxu0 0.0
        %352 = vmatprep.subr.mxu0 0.0
        %353 = vmatpush1.msra.mxu0 0.0
        %354 = vmatprep.subr.mxu0 0.0
        %355 = vmatpush1.msra.mxu0 0.0
        %356 = vmatprep.subr.mxu0 0.0
        %357 = vmatpush1.msra.mxu0 0.0
        %358 = vmatprep.subr.mxu0 0.0
        %359 = vmatpush1.msra.mxu0 0.0
        %360 = vmatprep.subr.mxu0 0.0
        %361 = vmatpush1.msra.mxu0 0.0
        %362 = vmatprep.subr.mxu0 0.0
        %363 = vmatpush1.msra.mxu0 0.0
        %364 = vmatprep.subr.mxu0 0.0
        %365 = vmatpush1.msra.mxu0 0.0
        %366 = vmatprep.subr.mxu0 0.0
        %367 = vmatpush1.msra.mxu0 0.0
        %368 = vmatprep.subr.mxu0 0.0
        %369 = vmatpush1.msra.mxu0 0.0
        %370 = vmatprep.subr.mxu0 0.0
        %371 = vmatpush1.msra.mxu0 0.0
        %372 = vmatprep.subr.mxu0 0.0
        %373 = vmatpush1.msra.mxu0 0.0
        %374 = vmatprep.subr.mxu0 0.0
        %375 = vmatpush1.msra.mxu0 0.0
        %376 = vmatprep.subr.mxu0 0.0
        %377 = vmatpush1.msra.mxu0 0.0
        %378 = vmatprep.subr.mxu0 0.0
        %379 = vmatpush1.msra.mxu0 0.0
        %380 = vmatprep.subr.mxu0 0.0
        %381 = vmatpush1.msra.mxu0 0.0
        %382 = vmatprep.subr.mxu0 0.0
        %383 = vmatpush1.msra.mxu0 0.0
        %384 = vmatprep.subr.mxu0 0.0
        %385 = vmatpush1.msra.mxu0 0.0
        %386 = vmatprep.subr.mxu0 0.0
        %387 = vmatpush1.msra.mxu0 0.0
        %388 = vmatprep.subr.mxu0 0.0
        %389 = vmatpush1.msra.mxu0 0.0
        %390 = vmatprep.subr.mxu0 0.0
        %391 = vmatpush1.msra.mxu0 0.0
        %392 = vmatprep.subr.mxu0 0.0
        %393 = vmatpush1.msra.mxu0 0.0
        %394 = vmatprep.subr.mxu0 0.0
        %395 = vmatpush1.msra.mxu0 0.0
        %396 = vmatprep.subr.mxu0 0.0
        %397 = vmatpush1.msra.mxu0 0.0
        %398 = vmatprep.subr.mxu0 0.0
        %399 = vmatpush1.msra.mxu0 0.0
        %400 = vmatprep.subr.mxu0 0.0
        %401 = vmatpush1.msra.mxu0 0.0
        %402 = vmatprep.subr.mxu0 0.0
        %403 = vmatpush1.msra.mxu0 0.0
        %404 = vmatprep.subr.mxu0 0.0
        %405 = vmatpush1.msra.mxu0 0.0
        %406 = vmatprep.subr.mxu0 0.0
        %407 = vmatpush1.msra.mxu0 0.0
        %408 = vmatprep.mubr.f32.mxu0 0.0
        %409 = vmatmul.mubr.f32.gmra.mrb[0].mxu0 %v297
        %v410 = vpop.f32.mrb[0].mxu0
        %v411 = vadd.f32 0.0, %v410
        %v412 = vpop.f32.mrb[0].mxu0
        %413 = vmatprep.mubr.f32.mxu0 0.0
        %414 = vmatmul.mubr.f32.gmra.mrb[0].mxu0 %v300
        %v415 = vpop.f32.mrb[0].mxu0
        %v416 = vadd.f32 0.0, %v415
        %v417 = vpop.f32.mrb[0].mxu0
        %418 = vmatprep.mubr.f32.mxu0 0.0
        %419 = vmatmul.mubr.f32.gmra.mrb[0].mxu0 %v303
        %v420 = vpop.f32.mrb[0].mxu0
        %v421 = vadd.f32 0.0, %v420
        %v422 = vpop.f32.mrb[0].mxu0
        %423 = vmatprep.mubr.f32.mxu0 0.0
        %424 = vmatmul.mubr.f32.gmra.mrb[0].mxu0 %v306
        %v425 = vpop.f32.mrb[0].mxu0
        %v426 = vadd.f32 0.0, %v425
        %v427 = vpop.f32.mrb[0].mxu0
        %428 = vmatprep.mubr.f32.mxu0 0.0
        %429 = vmatmul.mubr.f32.gmra.mrb[0].mxu0 %v309
        %v430 = vpop.f32.mrb[0].mxu0
        %v431 = vadd.f32 0.0, %v430
        %v432 = vpop.f32.mrb[0].mxu0
        %433 = vmatprep.mubr.f32.mxu0 0.0
        %434 = vmatmul.mubr.f32.gmra.mrb[0].mxu0 %v312
        %v435 = vpop.f32.mrb[0].mxu0
        %v436 = vadd.f32 0.0, %v435
        %v437 = vpop.f32.mrb[0].mxu0
        %438 = vmatprep.mubr.f32.mxu0 0.0
        %439 = vmatmul.mubr.f32.gmra.mrb[0].mxu0 %v315
        %v440 = vpop.f32.mrb[0].mxu0
        %v441 = vadd.f32 0.0, %v440
        %v442 = vpop.f32.mrb[0].mxu0
        %443 = vmatprep.mubr.f32.mxu0 0.0
        %444 = vmatmul.mubr.f32.gmra.mrb[0].mxu0 %v318
        %v445 = vpop.f32.mrb[0].mxu0
        %v446 = vadd.f32 0.0, %v445
        %v447 = vpop.f32.mrb[0].mxu0
        %448 = vmatprep.mubr.f32.mxu0 0.0
        %449 = vmatmul.mubr.f32.gmra.mrb[0].mxu0 %v321
        %v450 = vpop.f32.mrb[0].mxu0
        %v451 = vadd.f32 0.0, %v450
        %v452 = vpop.f32.mrb[0].mxu0
        %453 = vmatprep.mubr.f32.mxu0 0.0
        %454 = vmatmul.mubr.f32.gmra.mrb[0].mxu0 %v324
        %v455 = vpop.f32.mrb[0].mxu0
        %v456 = vadd.f32 0.0, %v455
        %v457 = vpop.f32.mrb[0].mxu0
        %458 = vmatprep.mubr.f32.mxu0 0.0
        %459 = vmatmul.mubr.f32.gmra.mrb[0].mxu0 %v327
        %v460 = vpop.f32.mrb[0].mxu0
        %v461 = vadd.f32 0.0, %v460
        %v462 = vpop.f32.mrb[0].mxu0
        %463 = vmatprep.mubr.f32.mxu0 0.0
        %464 = vmatmul.mubr.f32.gmra.mrb[0].mxu0 %v330
        %v465 = vpop.f32.mrb[0].mxu0
        %v466 = vadd.f32 0.0, %v465
        %v467 = vpop.f32.mrb[0].mxu0
        %468 = vmatprep.mubr.f32.mxu0 0.0
        %469 = vmatmul.mubr.f32.gmra.mrb[0].mxu0 %v333
        %v470 = vpop.f32.mrb[0].mxu0
        %v471 = vadd.f32 0.0, %v470
        %v472 = vpop.f32.mrb[0].mxu0
        %473 = vmatprep.mubr.f32.mxu0 0.0
        %474 = vmatmul.mubr.f32.gmra.mrb[0].mxu0 %v336
        %v475 = vpop.f32.mrb[0].mxu0
        %v476 = vadd.f32 0.0, %v475
        %v477 = vpop.f32.mrb[0].mxu0
        %478 = vmatprep.mubr.f32.mxu0 0.0
        %479 = vmatmul.mubr.f32.gmra.mrb[0].mxu0 %v339
        %v480 = vpop.f32.mrb[0].mxu0
        %v481 = vadd.f32 0.0, %v480
        %v482 = vpop.f32.mrb[0].mxu0
        %483 = vmatprep.mubr.f32.mxu0 0.0
        %484 = vmatmul.mubr.f32.gmra.mrb[0].mxu0 %v342
        %v485 = vpop.f32.mrb[0].mxu0
        %v486 = vadd.f32 0.0, %v485
        %v487 = vpop.f32.mrb[0].mxu0
        %488 = vdwg.mxu0
        %v489 = vld [vmem:[%s2] sm:$0xff]
        %490 = vmatprep.subr.mxu0 0.0
        %491 = vmatpush1.xpose.msra.mxu0 %v411
        %492 = vmatprep.subr.mxu0 0.0
        %493 = vmatpush1.xpose.msra.mxu0 %v416
        %494 = vmatprep.subr.mxu0 0.0
        %495 = vmatpush1.xpose.msra.mxu0 %v421
        %496 = vmatprep.subr.mxu0 0.0
        %497 = vmatpush1.xpose.msra.mxu0 %v426
        %498 = vmatprep.subr.mxu0 0.0
        %499 = vmatpush1.xpose.msra.mxu0 %v431
        %500 = vmatprep.subr.mxu0 0.0
        %501 = vmatpush1.xpose.msra.mxu0 %v436
        %502 = vmatprep.subr.mxu0 0.0
        %503 = vmatpush1.xpose.msra.mxu0 %v441
        %504 = vmatprep.subr.mxu0 0.0
        %505 = vmatpush1.xpose.msra.mxu0 %v446
        %506 = vmatprep.subr.mxu0 0.0
        %507 = vmatpush1.xpose.msra.mxu0 %v451
        %508 = vmatprep.subr.mxu0 0.0
        %509 = vmatpush1.xpose.msra.mxu0 %v456
        %510 = vmatprep.subr.mxu0 0.0
        %511 = vmatpush1.xpose.msra.mxu0 %v461
        %512 = vmatprep.subr.mxu0 0.0
        %513 = vmatpush1.xpose.msra.mxu0 %v466
        %514 = vmatprep.subr.mxu0 0.0
        %515 = vmatpush1.xpose.msra.mxu0 %v471
        %516 = vmatprep.subr.mxu0 0.0
        %517 = vmatpush1.xpose.msra.mxu0 %v476
        %518 = vmatprep.subr.mxu0 0.0
        %519 = vmatpush1.xpose.msra.mxu0 %v481
        %520 = vmatprep.subr.mxu0 0.0
        %521 = vmatpush1.xpose.msra.mxu0 %v486
        %522 = vmatprep.subr.mxu0 0.0
        %523 = vmatpush1.xpose.msra.mxu0 0.0
        %524 = vmatprep.subr.mxu0 0.0
        %525 = vmatpush1.xpose.msra.mxu0 0.0
        %526 = vmatprep.subr.mxu0 0.0
        %527 = vmatpush1.xpose.msra.mxu0 0.0
        %528 = vmatprep.subr.mxu0 0.0
        %529 = vmatpush1.xpose.msra.mxu0 0.0
        %530 = vmatprep.subr.mxu0 0.0
        %531 = vmatpush1.xpose.msra.mxu0 0.0
        %532 = vmatprep.subr.mxu0 0.0
        %533 = vmatpush1.xpose.msra.mxu0 0.0
        %534 = vmatprep.subr.mxu0 0.0
        %535 = vmatpush1.xpose.msra.mxu0 0.0
        %536 = vmatprep.subr.mxu0 0.0
        %537 = vmatpush1.xpose.msra.mxu0 0.0
        %538 = vmatprep.subr.mxu0 0.0
        %539 = vmatpush1.xpose.msra.mxu0 0.0
        %540 = vmatprep.subr.mxu0 0.0
        %541 = vmatpush1.xpose.msra.mxu0 0.0
        %542 = vmatprep.subr.mxu0 0.0
        %543 = vmatpush1.xpose.msra.mxu0 0.0
        %544 = vmatprep.subr.mxu0 0.0
        %545 = vmatpush1.xpose.msra.mxu0 0.0
        %546 = vmatprep.subr.mxu0 0.0
        %547 = vmatpush1.xpose.msra.mxu0 0.0
        %548 = vmatprep.subr.mxu0 0.0
        %549 = vmatpush1.xpose.msra.mxu0 0.0
        %550 = vmatprep.subr.mxu0 0.0
        %551 = vmatpush1.xpose.msra.mxu0 0.0
        %552 = vmatprep.subr.mxu0 0.0
        %553 = vmatpush1.xpose.msra.mxu0 0.0
        %554 = vmatprep.mubr.f32.mxu0 0.0
        %555 = vmatmul.mubr.f32.gmra.mrb[0].mxu0 %v489
        %v556 = vpop.f32.mrb[0].mxu0
        %v557 = vadd.f32 0.0, %v556
        %v558 = vpop.f32.mrb[0].mxu0
        %559 = vdwg.mxu0
        %560 = vst [vmem:[%s256] sm:$0xff] %v557
        %v561 = vld [vmem:[%s3] sm:$0xff]
        %v562 = vld [vmem:[%s3 + $0x8] sm:$0xff]
        %v563 = vld [vmem:[%s3 + $0x10] sm:$0xff]
        %v564 = vld [vmem:[%s3 + $0x18] sm:$0xff]
        %v565 = vld [vmem:[%s3 + $0x20] sm:$0xff]
        %v566 = vld [vmem:[%s3 + $0x28] sm:$0xff]
        %v567 = vld [vmem:[%s3 + $0x30] sm:$0xff]
        %v568 = vld [vmem:[%s3 + $0x38] sm:$0xff]
        %v569 = vld [vmem:[%s3 + $0x40] sm:$0xff]
        %v570 = vld [vmem:[%s3 + $0x48] sm:$0xff]
        %v571 = vld [vmem:[%s3 + $0x50] sm:$0xff]
        %v572 = vld [vmem:[%s3 + $0x58] sm:$0xff]
        %v573 = vld [vmem:[%s3 + $0x60] sm:$0xff]
        %v574 = vld [vmem:[%s3 + $0x68] sm:$0xff]
        %v575 = vld [vmem:[%s3 + $0x70] sm:$0xff]
        %v576 = vld [vmem:[%s3 + $0x78] sm:$0xff]
        %577 = vmatprep.subr.mxu0 0.0
        %578 = vmatpush1.msra.mxu0 %v561
        %579 = vmatprep.subr.mxu0 0.0
        %580 = vmatpush1.msra.mxu0 %v562
        %581 = vmatprep.subr.mxu0 0.0
        %582 = vmatpush1.msra.mxu0 %v563
        %583 = vmatprep.subr.mxu0 0.0
        %584 = vmatpush1.msra.mxu0 %v564
        %585 = vmatprep.subr.mxu0 0.0
        %586 = vmatpush1.msra.mxu0 %v565
        %587 = vmatprep.subr.mxu0 0.0
        %588 = vmatpush1.msra.mxu0 %v566
        %589 = vmatprep.subr.mxu0 0.0
        %590 = vmatpush1.msra.mxu0 %v567
        %591 = vmatprep.subr.mxu0 0.0
        %592 = vmatpush1.msra.mxu0 %v568
        %593 = vmatprep.subr.mxu0 0.0
        %594 = vmatpush1.msra.mxu0 %v569
        %595 = vmatprep.subr.mxu0 0.0
        %596 = vmatpush1.msra.mxu0 %v570
        %597 = vmatprep.subr.mxu0 0.0
        %598 = vmatpush1.msra.mxu0 %v571
        %599 = vmatprep.subr.mxu0 0.0
        %600 = vmatpush1.msra.mxu0 %v572
        %601 = vmatprep.subr.mxu0 0.0
        %602 = vmatpush1.msra.mxu0 %v573
        %603 = vmatprep.subr.mxu0 0.0
        %604 = vmatpush1.msra.mxu0 %v574
        %605 = vmatprep.subr.mxu0 0.0
        %606 = vmatpush1.msra.mxu0 %v575
        %607 = vmatprep.subr.mxu0 0.0
        %608 = vmatpush1.msra.mxu0 %v576
        %609 = vmatprep.subr.mxu0 0.0
        %610 = vmatpush1.msra.mxu0 0.0
        %611 = vmatprep.subr.mxu0 0.0
        %612 = vmatpush1.msra.mxu0 0.0
        %613 = vmatprep.subr.mxu0 0.0
        %614 = vmatpush1.msra.mxu0 0.0
        %615 = vmatprep.subr.mxu0 0.0
        %616 = vmatpush1.msra.mxu0 0.0
        %617 = vmatprep.subr.mxu0 0.0
        %618 = vmatpush1.msra.mxu0 0.0
        %619 = vmatprep.subr.mxu0 0.0
        %620 = vmatpush1.msra.mxu0 0.0
        %621 = vmatprep.subr.mxu0 0.0
        %622 = vmatpush1.msra.mxu0 0.0
        %623 = vmatprep.subr.mxu0 0.0
        %624 = vmatpush1.msra.mxu0 0.0
        %625 = vmatprep.subr.mxu0 0.0
        %626 = vmatpush1.msra.mxu0 0.0
        %627 = vmatprep.subr.mxu0 0.0
        %628 = vmatpush1.msra.mxu0 0.0
        %629 = vmatprep.subr.mxu0 0.0
        %630 = vmatpush1.msra.mxu0 0.0
        %631 = vmatprep.subr.mxu0 0.0
        %632 = vmatpush1.msra.mxu0 0.0
        %633 = vmatprep.subr.mxu0 0.0
        %634 = vmatpush1.msra.mxu0 0.0
        %635 = vmatprep.subr.mxu0 0.0
        %636 = vmatpush1.msra.mxu0 0.0
        %637 = vmatprep.subr.mxu0 0.0
        %638 = vmatpush1.msra.mxu0 0.0
        %639 = vmatprep.subr.mxu0 0.0
        %640 = vmatpush1.msra.mxu0 0.0
        %641 = vmatprep.mubr.f32.mxu0 0.0
        %642 = vmatmul.mubr.f32.gmra.mrb[0].mxu0 %v411
        %v643 = vpop.f32.mrb[0].mxu0
        %v644 = vadd.f32 0.0, %v643
        %v645 = vpop.f32.mrb[0].mxu0
        %646 = vmatprep.mubr.f32.mxu0 0.0
        %647 = vmatmul.mubr.f32.gmra.mrb[0].mxu0 %v416
        %v648 = vpop.f32.mrb[0].mxu0
        %v649 = vadd.f32 0.0, %v648
        %v650 = vpop.f32.mrb[0].mxu0
        %651 = vmatprep.mubr.f32.mxu0 0.0
        %652 = vmatmul.mubr.f32.gmra.mrb[0].mxu0 %v421
        %v653 = vpop.f32.mrb[0].mxu0
        %v654 = vadd.f32 0.0, %v653
        %v655 = vpop.f32.mrb[0].mxu0
        %656 = vmatprep.mubr.f32.mxu0 0.0
        %657 = vmatmul.mubr.f32.gmra.mrb[0].mxu0 %v426
        %v658 = vpop.f32.mrb[0].mxu0
        %v659 = vadd.f32 0.0, %v658
        %v660 = vpop.f32.mrb[0].mxu0
        %661 = vmatprep.mubr.f32.mxu0 0.0
        %662 = vmatmul.mubr.f32.gmra.mrb[0].mxu0 %v431
        %v663 = vpop.f32.mrb[0].mxu0
        %v664 = vadd.f32 0.0, %v663
        %v665 = vpop.f32.mrb[0].mxu0
        %666 = vmatprep.mubr.f32.mxu0 0.0
        %667 = vmatmul.mubr.f32.gmra.mrb[0].mxu0 %v436
        %v668 = vpop.f32.mrb[0].mxu0
        %v669 = vadd.f32 0.0, %v668
        %v670 = vpop.f32.mrb[0].mxu0
        %671 = vmatprep.mubr.f32.mxu0 0.0
        %672 = vmatmul.mubr.f32.gmra.mrb[0].mxu0 %v441
        %v673 = vpop.f32.mrb[0].mxu0
        %v674 = vadd.f32 0.0, %v673
        %v675 = vpop.f32.mrb[0].mxu0
        %676 = vmatprep.mubr.f32.mxu0 0.0
        %677 = vmatmul.mubr.f32.gmra.mrb[0].mxu0 %v446
        %v678 = vpop.f32.mrb[0].mxu0
        %v679 = vadd.f32 0.0, %v678
        %v680 = vpop.f32.mrb[0].mxu0
        %681 = vmatprep.mubr.f32.mxu0 0.0
        %682 = vmatmul.mubr.f32.gmra.mrb[0].mxu0 %v451
        %v683 = vpop.f32.mrb[0].mxu0
        %v684 = vadd.f32 0.0, %v683
        %v685 = vpop.f32.mrb[0].mxu0
        %686 = vmatprep.mubr.f32.mxu0 0.0
        %687 = vmatmul.mubr.f32.gmra.mrb[0].mxu0 %v456
        %v688 = vpop.f32.mrb[0].mxu0
        %v689 = vadd.f32 0.0, %v688
        %v690 = vpop.f32.mrb[0].mxu0
        %691 = vmatprep.mubr.f32.mxu0 0.0
        %692 = vmatmul.mubr.f32.gmra.mrb[0].mxu0 %v461
        %v693 = vpop.f32.mrb[0].mxu0
        %v694 = vadd.f32 0.0, %v693
        %v695 = vpop.f32.mrb[0].mxu0
        %696 = vmatprep.mubr.f32.mxu0 0.0
        %697 = vmatmul.mubr.f32.gmra.mrb[0].mxu0 %v466
        %v698 = vpop.f32.mrb[0].mxu0
        %v699 = vadd.f32 0.0, %v698
        %v700 = vpop.f32.mrb[0].mxu0
        %701 = vmatprep.mubr.f32.mxu0 0.0
        %702 = vmatmul.mubr.f32.gmra.mrb[0].mxu0 %v471
        %v703 = vpop.f32.mrb[0].mxu0
        %v704 = vadd.f32 0.0, %v703
        %v705 = vpop.f32.mrb[0].mxu0
        %706 = vmatprep.mubr.f32.mxu0 0.0
        %707 = vmatmul.mubr.f32.gmra.mrb[0].mxu0 %v476
        %v708 = vpop.f32.mrb[0].mxu0
        %v709 = vadd.f32 0.0, %v708
        %v710 = vpop.f32.mrb[0].mxu0
        %711 = vmatprep.mubr.f32.mxu0 0.0
        %712 = vmatmul.mubr.f32.gmra.mrb[0].mxu0 %v481
        %v713 = vpop.f32.mrb[0].mxu0
        %v714 = vadd.f32 0.0, %v713
        %v715 = vpop.f32.mrb[0].mxu0
        %716 = vmatprep.mubr.f32.mxu0 0.0
        %717 = vmatmul.mubr.f32.gmra.mrb[0].mxu0 %v486
        %v718 = vpop.f32.mrb[0].mxu0
        %v719 = vadd.f32 0.0, %v718
        %v720 = vpop.f32.mrb[0].mxu0
        %721 = vdwg.mxu0
        %vm722 = vcmask 64512
        %723 = vst.msk [vmem:[%s275] sm:$0xff] %vm722, %v644
        %724 = vst.msk [vmem:[%s275 + $0x8] sm:$0xff] %vm722, %v649
        %725 = vst.msk [vmem:[%s275 + $0x10] sm:$0xff] %vm722, %v654
        %726 = vst.msk [vmem:[%s275 + $0x18] sm:$0xff] %vm722, %v659
        %727 = vst.msk [vmem:[%s275 + $0x20] sm:$0xff] %vm722, %v664
        %728 = vst.msk [vmem:[%s275 + $0x28] sm:$0xff] %vm722, %v669
        %729 = vst.msk [vmem:[%s275 + $0x30] sm:$0xff] %vm722, %v674
        %730 = vst.msk [vmem:[%s275 + $0x38] sm:$0xff] %vm722, %v679
        %731 = vst.msk [vmem:[%s275 + $0x40] sm:$0xff] %vm722, %v684
        %732 = vst.msk [vmem:[%s275 + $0x48] sm:$0xff] %vm722, %v689
        %733 = vst.msk [vmem:[%s275 + $0x50] sm:$0xff] %vm722, %v694
        %734 = vst.msk [vmem:[%s275 + $0x58] sm:$0xff] %vm722, %v699
        %735 = vst.msk [vmem:[%s275 + $0x60] sm:$0xff] %vm722, %v704
        %736 = vst.msk [vmem:[%s275 + $0x68] sm:$0xff] %vm722, %v709
        %737 = vst.msk [vmem:[%s275 + $0x70] sm:$0xff] %vm722, %v714
        %738 = vst.msk [vmem:[%s275 + $0x78] sm:$0xff] %vm722, %v719
        %v739 = vpack.c.bf16 %v416, %v411
        %v740 = vpack.c.bf16 %v426, %v421
        %v741 = vpack.c.bf16 %v436, %v431
        %v742 = vpack.c.bf16 %v446, %v441
        %v743 = vpack.c.bf16 %v456, %v451
        %v744 = vpack.c.bf16 %v466, %v461
        %v745 = vpack.c.bf16 %v476, %v471
        %v746 = vpack.c.bf16 %v486, %v481
        %v755 = vunpack.c.l.b16 %v739
        %v756 = vunpack.c.h.b16 %v739
        %v757 = vunpack.c.l.b16 %v740
        %v758 = vunpack.c.h.b16 %v740
        %v759 = vunpack.c.l.b16 %v741
        %v760 = vunpack.c.h.b16 %v741
        %v761 = vunpack.c.l.b16 %v742
        %v762 = vunpack.c.h.b16 %v742
        %v763 = vunpack.c.l.b16 %v743
        %v764 = vunpack.c.h.b16 %v743
        %v765 = vunpack.c.l.b16 %v744
        %v766 = vunpack.c.h.b16 %v744
        %v767 = vunpack.c.l.b16 %v745
        %v768 = vunpack.c.h.b16 %v745
        %v769 = vunpack.c.l.b16 %v746
        %v770 = vunpack.c.h.b16 %v746
        %v771 = vpack.c.b16 %v755, %v755
        %v772 = vpack.c.b16 %v756, %v756
        %v773 = vpack.c.b16 %v757, %v757
        %v774 = vpack.c.b16 %v758, %v758
        %v775 = vpack.c.b16 %v759, %v759
        %v776 = vpack.c.b16 %v760, %v760
        %v777 = vpack.c.b16 %v761, %v761
        %v778 = vpack.c.b16 %v762, %v762
        %v779 = vpack.c.b16 %v763, %v763
        %v780 = vpack.c.b16 %v764, %v764
        %v781 = vpack.c.b16 %v765, %v765
        %v782 = vpack.c.b16 %v766, %v766
        %v783 = vpack.c.b16 %v767, %v767
        %v784 = vpack.c.b16 %v768, %v768
        %v785 = vpack.c.b16 %v769, %v769
        %v786 = vpack.c.b16 %v770, %v770
        %803 = vst [vmem:[%s249] sm:$0xf] %v771
        %804 = vst [vmem:[%s249 + $0x4] sm:$0xf] %v772
        %805 = vst [vmem:[%s249 + $0x8] sm:$0xf] %v773
        %806 = vst [vmem:[%s249 + $0xc] sm:$0xf] %v774
        %807 = vst [vmem:[%s249 + $0x10] sm:$0xf] %v775
        %808 = vst [vmem:[%s249 + $0x14] sm:$0xf] %v776
        %809 = vst [vmem:[%s249 + $0x18] sm:$0xf] %v777
        %810 = vst [vmem:[%s249 + $0x1c] sm:$0xf] %v778
        %811 = vst [vmem:[%s249 + $0x20] sm:$0xf] %v779
        %812 = vst [vmem:[%s249 + $0x24] sm:$0xf] %v780
        %813 = vst [vmem:[%s249 + $0x28] sm:$0xf] %v781
        %814 = vst [vmem:[%s249 + $0x2c] sm:$0xf] %v782
        %815 = vst [vmem:[%s249 + $0x30] sm:$0xf] %v783
        %816 = vst [vmem:[%s249 + $0x34] sm:$0xf] %v784
        %817 = vst [vmem:[%s249 + $0x38] sm:$0xf] %v785
        %818 = vst [vmem:[%s249 + $0x3c] sm:$0xf] %v786
        %s819 = sand.u32 %s121, 1
        %s820 = scalar_lea.sflag [#allocation3], %s819
        %s821 = sand.u32 %s121, 1
        %s822 = smul.addr %s821, 64
        %s823 = scalar_lea.vmem [#allocation2], %s822
        %s824 = sand.u32 %s147, 1
        %s825 = scalar_lea.sflag [#allocation5], %s824
        %s826 = sand.u32 %s147, 1
        %s827 = smul.addr %s826, 8
        %s828 = scalar_lea.vmem [#allocation4], %s827
        %s829 = smul.u32 16, %s24
        %p830 = scmp.lt.s32.totalorder %s829, 31
        %s831 = scalar_select %p830, %s829, 31
        %s832 = smul.addr %s831, 8
        %s833 = scalar_lea.vmem %s6, %s832
        // Predicated region
        $region37: #{tpu_custom_call.1} parent=35 // pred_check
          %p834 = pneg %p131
        $region38: #{tpu_custom_call.1} parent=35 // pred_check_branch
          %836 = sbr.rel (%p834) target = $region40
        $region39: #{tpu_custom_call.1} parent=35 // pred_region
          %s837 = smul.u32 16, %s24
          %s839 = ssub.s32 1024, 1024
          %840 = vsyncadd %s820, %s839
          %s841 = smul.addr %s837, 64
          %s842 = scalar_lea.hbm %s4, %s841
          %s843 = sshll.u32 %s823, 4
          %s844 = int_to_ptr.vmem [resolvable:$true] %s843
          %849 = dma.vmem_to_hbm [thread:$0]  %s844, 1024, %s842, %s820, 64, 64, 4
        $region40: #{tpu_custom_call.1} parent=35 // pred_fallthru
          _
        // Predicated region
        $region41: #{tpu_custom_call.1} parent=35 // pred_check
          %p850 = pneg %p157
        $region42: #{tpu_custom_call.1} parent=35 // pred_check_branch
          %852 = sbr.rel (%p850) target = $region44
        $region43: #{tpu_custom_call.1} parent=35 // pred_region
          %s854 = ssub.s32 128, 128
          %855 = vsyncadd %s825, %s854
          %s856 = smul.addr %s24, 128
          %s857 = scalar_lea.hbm %s5, %s856
          %s859 = sshll.u32 %s828, 4
          %s860 = int_to_ptr.vmem [resolvable:$true] %s859
          %862 = dma.vmem_to_hbm [thread:$0]  %s860, 128, %s857, %s825
        $region44: #{tpu_custom_call.1} parent=35 // pred_fallthru
          _
        // Predicated region
        $region45: #{tpu_custom_call.1} parent=35 // pred_check
          %p863 = pneg %p183
        $region46: #{tpu_custom_call.1} parent=35 // pred_check_branch
          %865 = sbr.rel (%p863) target = $region48
        $region47: #{tpu_custom_call.1} parent=35 // pred_region
          %s866 = smul.u32 16, %s24
        $region48: #{tpu_custom_call.1} parent=35 // pred_fallthru
          _
      $region36: #{tpu_custom_call.1} parent=5 // pred_fallthru
        _
      %p867 = scmp.le.s32.totalorder 2, %s19
      // Predicated region
      $region49: #{tpu_custom_call.1} parent=5 // pred_check
        %p868 = pneg %p867
      $region50: #{tpu_custom_call.1} parent=5 // pred_check_branch
        %870 = sbr.rel (%p868) target = $region52
      $region51: #{tpu_custom_call.1} parent=5 // pred_region
        %s871 = ssub.s32 %s19, 2
        // Predicated region
        $region53: #{tpu_custom_call.1} parent=51 // pred_check
          %p872 = pneg %p137
        $region54: #{tpu_custom_call.1} parent=51 // pred_check_branch
          %874 = sbr.rel (%p872) target = $region56
        $region55: #{tpu_custom_call.1} parent=51 // pred_region
          %s875 = sand.u32 %s122, 1
          %s876 = scalar_lea.sflag [#allocation3], %s875
          %s877 = sand.u32 %s122, 1
          %s878 = smul.addr %s877, 64
          %s879 = scalar_lea.vmem [#allocation2], %s878
          %880 = dma.done %s876, 1024
        $region56: #{tpu_custom_call.1} parent=51 // pred_fallthru
          _
        // Predicated region
        $region57: #{tpu_custom_call.1} parent=51 // pred_check
          %p881 = pneg %p163
        $region58: #{tpu_custom_call.1} parent=51 // pred_check_branch
          %883 = sbr.rel (%p881) target = $region60
        $region59: #{tpu_custom_call.1} parent=51 // pred_region
          %s884 = sand.u32 %s148, 1
          %s885 = scalar_lea.sflag [#allocation5], %s884
          %s886 = sand.u32 %s148, 1
          %s887 = smul.addr %s886, 8
          %s888 = scalar_lea.vmem [#allocation4], %s887
          %889 = dma.done %s885, 128
        $region60: #{tpu_custom_call.1} parent=51 // pred_fallthru
          _
        // Predicated region
        $region61: #{tpu_custom_call.1} parent=51 // pred_check
          %p890 = pneg %p189
        $region62: #{tpu_custom_call.1} parent=51 // pred_check_branch
          %892 = sbr.rel (%p890) target = $region64
        $region63: #{tpu_custom_call.1} parent=51 // pred_region
          %s893 = smul.u32 16, %s25
          %p894 = scmp.lt.s32.totalorder %s893, 31
          %s895 = scalar_select %p894, %s893, 31
          %s896 = smul.addr %s895, 8
          %s897 = scalar_lea.vmem %s6, %s896
        $region64: #{tpu_custom_call.1} parent=51 // pred_fallthru
          _
      $region52: #{tpu_custom_call.1} parent=5 // pred_fallthru
        _
    $region6: #{tpu_custom_call.1} parent=1 // loop_footer
      %s23 = sadd.s32 1, %s19
    $region7: #{tpu_custom_call.1} parent=1 // loop_footer_branch
      %18 = sbr.rel target = $region3
    $region8: #{tpu_custom_call.1} parent=1 // loop_exit
      _
    %898 = vsyncpa [#allocation3], 1
    %s899 = scalar_lea.sflag [#allocation3], 1
    %900 = vsyncpa %s899, 1
    %901 = vsyncpa [#allocation5], 1
    %s902 = scalar_lea.sflag [#allocation5], 1
    %903 = vsyncpa %s902, 1

</llo_original>
